<compile_context>
chip_gen: v7x
topology: tpu7x:2x2x1
jax: 0.10.0
libtpu: 0.0.40
codegen_flags: <defaults>
</compile_context>

<pallas_src>
import functools
import math

import numpy as np
import jax
import jax.numpy as jnp
from jax.experimental import pallas as pl
from jax.experimental.pallas import tpu as pltpu


# ----------------------------------------------------------------------------
# Pallas kernels
# ----------------------------------------------------------------------------
def _similarity_kernel(p_ref, g_ref, o_ref):
    """score tile = pred_tile @ gt_tile.T via dot_general contracting the
    feature dim of both operands (no in-kernel transpose)."""
    o_ref[...] = jax.lax.dot_general(
        p_ref[...], g_ref[...],
        dimension_numbers=(((1,), (1,)), ((), ())),
        preferred_element_type=jnp.float32)


def _recurrent_kernel(feat_ref, wx_ref, wh_ref, who_ref, bg_ref,
                      b1_ref, w2_ref, b2_ref,
                      pred_ref,
                      h_scr, *, num_seq_in, f_dim):
    """One grid step (m, t) = one timestep of the DPC-RNN recurrence for one
    block of M rows (rows evolve independently through the 1x1 ConvGRU).

    t <  num_seq_in : aggregation step, x_t = relu(feature_t)
    t >= num_seq_in : prediction step,  p = network_pred(h), x_t = relu(p)
    then ConvGRU (kernel_size=1 -> channel matmuls, gates fused):
        gh = h @ [Whr | Whu | W1_pred]          (single fused matmul)
        gx = x @ [Wxr | Wxu | Wxo] + [br|bu|bo]
        r  = sigmoid(gx_r + gh_r);  u = sigmoid(gx_u + gh_u)
        o  = tanh(gx_o + (r*h) @ Who)
        h  = h*(1-u) + o*u
    h lives in VMEM scratch across the whole t axis; weights are VMEM-resident
    via constant-index BlockSpecs.
    """
    t = pl.program_id(1)
    F = f_dim

    @pl.when(t == 0)
    def _():
        h_scr[...] = jnp.zeros_like(h_scr)

    h = h_scr[...]
    hb = h.astype(jnp.bfloat16)
    # Fused h-side matmul: columns [0:F]=reset, [F:2F]=update, [2F:3F]=h@W1.
    gh = jnp.dot(hb, wh_ref[...], preferred_element_type=jnp.float32)

    def _pred_branch():
        # network_pred: Conv1x1 -> ReLU -> Conv1x1 (first conv fused into gh).
        y = jnp.maximum(gh[:, 2 * F:] + b1_ref[...], 0.0)
        return (jnp.dot(y.astype(jnp.bfloat16), w2_ref[...],
                        preferred_element_type=jnp.float32) + b2_ref[...])

    def _agg_branch():
        return feat_ref[0]

    p_or_feat = jax.lax.cond(t >= num_seq_in, _pred_branch, _agg_branch)

    @pl.when(t >= num_seq_in)
    def _():
        pred_ref[0] = p_or_feat

    x = jnp.maximum(p_or_feat, 0.0)           # relu(feature) or relu(pred)
    xb = x.astype(jnp.bfloat16)
    gx = (jnp.dot(xb, wx_ref[...], preferred_element_type=jnp.float32)
          + bg_ref[...])
    r = jax.nn.sigmoid(gx[:, :F] + gh[:, :F])
    u = jax.nn.sigmoid(gx[:, F:2 * F] + gh[:, F:2 * F])
    rh = (r * h).astype(jnp.bfloat16)
    o = jnp.tanh(gx[:, 2 * F:]
                 + jnp.dot(rh, who_ref[...], preferred_element_type=jnp.float32))
    h_scr[...] = h * (1.0 - u) + o * u


# ----------------------------------------------------------------------------
# Pallas-call wrappers
# ----------------------------------------------------------------------------
def _choose_row_tile(m):
    """Largest convenient row tile that divides M (multiple of 8 if possible)."""
    if m % 8 != 0:
        return m                      # full-extent block is always legal
    for cand in (256, 128, 64, 32, 16, 8):
        if m % cand == 0:
            return cand
    return m


def run_recurrence(feat_agg, params, pred_step):
    """feat_agg: (num_seq_in, M, F) f32 (pre-relu). Returns pred (P, M, F) f32."""
    T_in, M, F = feat_agg.shape
    T = T_in + pred_step
    tm = _choose_row_tile(M)
    m_blocks = M // tm

    const2 = lambda m, t: (0, 0)
    # Pred steps re-use the last (already-resident) feature block: no extra DMA.
    feat_map = lambda m, t: (jnp.minimum(t, T_in - 1), m, 0)
    # Aggregation steps keep output block 0 resident (never written until the
    # first prediction step); each pred block is written exactly once.
    out_map = lambda m, t: (jnp.maximum(t - T_in, 0), m, 0)

    flops = 2 * M * F * F * (7 * T + pred_step)          # gh(3F)+gx(3F)+Who(F) [+W2(F)]
    transcendentals = 3 * M * F * T                      # 2x sigmoid + tanh
    bytes_accessed = (T_in * M * F * 4 + pred_step * M * F * 4
                      + (3 * F * F + 3 * F * F + F * F + F * F) * 2
                      + (3 * F + 3 * F) * 4)

    out = pl.pallas_call(
        functools.partial(_recurrent_kernel, num_seq_in=T_in, f_dim=F),
        out_shape=jax.ShapeDtypeStruct((pred_step, M, F), jnp.float32),
        grid=(m_blocks, T),
        in_specs=[
            pl.BlockSpec((1, tm, F), feat_map),          # per-step feature
            pl.BlockSpec((F, 3 * F), const2),            # Wx_cat   (bf16)
            pl.BlockSpec((F, 3 * F), const2),            # [Whr|Whu|W1] (bf16)
            pl.BlockSpec((F, F), const2),                # Who      (bf16)
            pl.BlockSpec((1, 3 * F), const2),            # gate bias (f32)
            pl.BlockSpec((1, F), const2),                # pred b1
            pl.BlockSpec((F, F), const2),                # pred W2  (bf16)
            pl.BlockSpec((1, F), const2),                # pred b2
        ],
        out_specs=pl.BlockSpec((1, tm, F), out_map),
        scratch_shapes=[pltpu.VMEM((tm, F), jnp.float32)],   # h state
        compiler_params=pltpu.CompilerParams(
            dimension_semantics=("parallel", "arbitrary")),   # rows || , time sequential
        cost_estimate=pl.CostEstimate(
            flops=int(flops), transcendentals=int(transcendentals),
            bytes_accessed=int(bytes_accessed)),
    )(feat_agg,
      params["wx_cat"], params["wh_cat"], params["who"], params["b_cat"],
      params["b1"], params["w2"], params["b2"])
    return out


def similarity(pred_flat, gt_flat):
    """score = pred @ gt.T, tiled 128x128 with lane-dense (padded) stores."""
    MM, F = pred_flat.shape
    TS = 128
    Mp = ((MM + TS - 1) // TS) * TS
    p_pad = jnp.zeros((Mp, F), jnp.bfloat16).at[:MM].set(
        pred_flat.astype(jnp.bfloat16))
    g_pad = jnp.zeros((Mp, F), jnp.bfloat16).at[:MM].set(
        gt_flat.astype(jnp.bfloat16))

    score = pl.pallas_call(
        _similarity_kernel,
        out_shape=jax.ShapeDtypeStruct((Mp, Mp), jnp.float32),
        grid=(Mp // TS, Mp // TS),
        in_specs=[pl.BlockSpec((TS, F), lambda i, j: (i, 0)),
                  pl.BlockSpec((TS, F), lambda i, j: (j, 0))],
        out_specs=pl.BlockSpec((TS, TS), lambda i, j: (i, j)),
        compiler_params=pltpu.CompilerParams(
            dimension_semantics=("parallel", "parallel")),
        cost_estimate=pl.CostEstimate(
            flops=int(2 * Mp * Mp * F), transcendentals=0,
            bytes_accessed=int(2 * Mp * F * 2 + Mp * Mp * 4)),
    )(p_pad, g_pad)
    return score[:MM, :MM]


# ----------------------------------------------------------------------------
# Parameter initialization (orthogonal weights, zero biases — matches the
# PyTorch init semantics). Conv weights stored transposed as (in, out) for
# channels-last matmuls; matmul weights stored in bf16 (f32 accumulation).
# ----------------------------------------------------------------------------
def init_params(key, c_in, feature_size):
    ortho = jax.nn.initializers.orthogonal()
    ks = jax.random.split(key, 8)
    F = feature_size

    # Backbone-stub 1x1x1 projection (c_in -> F); left to XLA (memory-bound).
    bb_w = ortho(ks[0], (c_in, F), jnp.float32)
    bb_b = jnp.zeros((F,), jnp.float32)

    # ConvGRU gates: torch Conv2d weight shape (F, 2F, 1, 1); orthogonal over
    # the flattened (F, 2F), split into x/h parts, transpose to (in, out).
    def gru_gate(k):
        w_full = ortho(k, (F, 2 * F), jnp.float32)   # (out, in_x + in_h)
        wx = jnp.transpose(w_full[:, :F])            # (F, F) for x @ wx
        wh = jnp.transpose(w_full[:, F:])            # (F, F) for h @ wh
        return wx, wh

    wxr, whr = gru_gate(ks[1])
    wxu, whu = gru_gate(ks[2])
    wxo, who = gru_gate(ks[3])

    # network_pred: two Conv2d(F, F, 1) layers; W1 fused into the h-side matmul.
    w1 = jnp.transpose(ortho(ks[4], (F, F), jnp.float32))
    w2 = jnp.transpose(ortho(ks[5], (F, F), jnp.float32))

    wx_cat = jnp.concatenate([wxr, wxu, wxo], axis=1).astype(jnp.bfloat16)   # (F, 3F)
    wh_cat = jnp.concatenate([whr, whu, w1], axis=1).astype(jnp.bfloat16)    # (F, 3F)
    who = who.astype(jnp.bfloat16)                                           # (F, F)
    w2 = w2.astype(jnp.bfloat16)                                             # (F, F)
    b_cat = jnp.zeros((1, 3 * F), jnp.float32)                               # [br|bu|bo]
    b1 = jnp.zeros((1, F), jnp.float32)
    b2 = jnp.zeros((1, F), jnp.float32)

    return {
        "bb_w": bb_w, "bb_b": bb_b,
        "wx_cat": wx_cat, "wh_cat": wh_cat, "who": who, "b_cat": b_cat,
        "b1": b1, "w2": w2, "b2": b2,
    }


# ----------------------------------------------------------------------------
# Mask (exact port of DPC_RNN.compute_mask; numpy glue — not a hot path)
# ----------------------------------------------------------------------------
def compute_mask(B, P, D_out):
    D_out2 = D_out ** 2
    mask = np.zeros((B, P, D_out2, B, P, D_out2), dtype=np.int8)
    mask[np.arange(B), :, :, np.arange(B), :, :] = -3
    for k in range(B):
        mask[k, :, np.arange(D_out2), k, :, np.arange(D_out2)] = -1
    mask = np.transpose(mask, (0, 2, 1, 3, 5, 4)).reshape(B * D_out2, P, B * D_out2, P)
    for j in range(B * D_out2):
        mask[j, np.arange(P), j, np.arange(P)] = 1
    mask = mask.reshape(B, D_out2, P, B, D_out2, P).transpose(0, 2, 1, 3, 5, 4)
    return jnp.asarray(np.ascontiguousarray(mask), dtype=jnp.int8)


# ----------------------------------------------------------------------------
# DPC_RNN forward
# ----------------------------------------------------------------------------
@functools.partial(
    jax.jit,
    static_argnames=("num_seq_in", "pred_step", "seq_len", "input_size"))
def dpc_rnn_score(batch, params, *, num_seq_in, pred_step, seq_len, input_size):
    B, N, C, L, D, _ = batch.shape
    assert N == num_seq_in + pred_step
    L_out = int(math.ceil(seq_len / 4))
    D_out = int(math.ceil(input_size / 32))
    D_out2 = D_out * D_out
    F = params["w2"].shape[0]

    # ---- backbone stub + AvgPool3d (see TODO at top of file) ----
    # The temporal AvgPool3d((L_out,1,1)) commutes with the linear 1x1x1
    # projection, so pool over the full temporal dim first, then project once.
    x = batch.reshape(B, N, C, L_out, L // L_out, D_out, D // D_out,
                      D_out, D // D_out)
    x = x.mean(axis=(3, 4, 6, 8))                              # (B, N, C, Do, Do)
    x = jnp.transpose(x, (0, 1, 3, 4, 2))                      # channels-last
    feature = jnp.tensordot(x, params["bb_w"], axes=([-1], [0])) + params["bb_b"]
    # feature: (B, N, Do, Do, F), pre-relu

    ground_truth = feature[:, num_seq_in:]                     # (B, P, Do, Do, F)

    # ---- fused ConvGRU aggregation + pred_steps (single gridded kernel) ----
    M = B * D_out2
    feat_agg = jnp.transpose(feature[:, :num_seq_in],
                             (1, 0, 2, 3, 4)).reshape(num_seq_in, M, F)
    pred = run_recurrence(feat_agg, params, pred_step)         # (P, M, F)

    # ---- similarity score ----
    pred_flat = jnp.transpose(pred.reshape(pred_step, B, D_out2, F),
                              (1, 0, 2, 3)).reshape(B * pred_step * D_out2, F)
    gt_flat = ground_truth.reshape(B * pred_step * D_out2, F)
    score = similarity(pred_flat, gt_flat)
    return score.reshape(B, pred_step, D_out2, B, pred_step, D_out2)


def dpc_rnn_forward(batch, params, *, num_seq_in, pred_step, seq_len, input_size):
    score = dpc_rnn_score(batch, params, num_seq_in=num_seq_in,
                          pred_step=pred_step, seq_len=seq_len,
                          input_size=input_size)
    B = batch.shape[0]
    D_out = int(math.ceil(input_size / 32))
    mask = compute_mask(B, pred_step, D_out)
    return score, mask


# ----------------------------------------------------------------------------
# Main
# ----------------------------------------------------------------------------
if __name__ == "__main__":
    # Small shapes consistent with the module:
    #   input_size=64 -> D_out=2, seq_len=4 -> L_out=1,
    #   num_seq_in=2, pred_step=2 -> N=4; feature_size=128 (synthetic backbone,
    #   lane-dense per TPU perf guidance).
    B = 2
    num_seq_in = 2
    pred_step = 2
    N = num_seq_in + pred_step
    C_in = 3
    seq_len = 4
    input_size = 64
    feature_size = 128

    key = jax.random.PRNGKey(0)
    k_params, k_data = jax.random.split(key)
    params = init_params(k_params, C_in, feature_size)

    batch = jax.random.normal(
        k_data, (B, N, C_in, seq_len, input_size, input_size), dtype=jnp.float32)

    score, mask = dpc_rnn_forward(
        batch, params,
        num_seq_in=num_seq_in, pred_step=pred_step,
        seq_len=seq_len, input_size=input_size)

    jax.block_until_ready(score)
    jax.block_until_ready(mask)

    D_out = int(math.ceil(input_size / 32))
    D_out2 = D_out ** 2
    assert score.shape == (B, pred_step, D_out2, B, pred_step, D_out2)
    assert mask.shape == (B, pred_step, D_out2, B, pred_step, D_out2)
    assert mask.dtype == jnp.int8
    assert bool(jnp.all(jnp.isfinite(score)))

    print("KERNEL_OK")
</pallas_src>

<mosaic_0001>
module attributes {stable_mosaic.version = 11 : i64} {
  func.func @_recurrent_kernel(%arg0: i32, %arg1: i32, %arg2: memref<1x8x128xf32, #tpu.memory_space<vmem>>, %arg3: memref<128x384xbf16, #tpu.memory_space<vmem>>, %arg4: memref<128x384xbf16, #tpu.memory_space<vmem>>, %arg5: memref<128x128xbf16, #tpu.memory_space<vmem>>, %arg6: memref<1x384xf32, #tpu.memory_space<vmem>>, %arg7: memref<1x128xf32, #tpu.memory_space<vmem>>, %arg8: memref<128x128xbf16, #tpu.memory_space<vmem>>, %arg9: memref<1x128xf32, #tpu.memory_space<vmem>>, %arg10: memref<1x8x128xf32, #tpu.memory_space<vmem>>, %arg11: memref<8x128xf32, #tpu.memory_space<vmem>>) attributes {dimension_semantics = [#tpu.dimension_semantics<parallel>, #tpu.dimension_semantics<arbitrary>], iteration_bounds = array<i64: 1, 4>, scalar_prefetch = 0 : i64, scratch_operands = 1 : i64, tpu.core_type = #tpu.core_type<tc>, window_params = [{transform_indices = @transform_0, window_bounds = array<i64: 1, 8, 128>}, {pipeline_mode = #tpu.pipeline_mode<synchronous>, transform_indices = @transform_1, window_bounds = array<i64: 128, 384>}, {pipeline_mode = #tpu.pipeline_mode<synchronous>, transform_indices = @transform_2, window_bounds = array<i64: 128, 384>}, {pipeline_mode = #tpu.pipeline_mode<synchronous>, transform_indices = @transform_3, window_bounds = array<i64: 128, 128>}, {pipeline_mode = #tpu.pipeline_mode<synchronous>, transform_indices = @transform_4, window_bounds = array<i64: 1, 384>}, {pipeline_mode = #tpu.pipeline_mode<synchronous>, transform_indices = @transform_5, window_bounds = array<i64: 1, 128>}, {pipeline_mode = #tpu.pipeline_mode<synchronous>, transform_indices = @transform_6, window_bounds = array<i64: 128, 128>}, {pipeline_mode = #tpu.pipeline_mode<synchronous>, transform_indices = @transform_7, window_bounds = array<i64: 1, 128>}, {transform_indices = @transform_8, window_bounds = array<i64: 1, 8, 128>}]} {
    %c0_i32 = arith.constant 0 : i32
    %0 = arith.cmpi eq, %arg1, %c0_i32 : i32
    %1 = arith.extui %0 : i1 to i32
    %c0_i32_0 = arith.constant 0 : i32
    %2 = arith.cmpi ne, %1, %c0_i32_0 : i32
    scf.if %2 {
      %cst_21 = arith.constant 0.000000e+00 : f32
      %51 = vector.broadcast %cst_21 : f32 to vector<8x128xf32>
      %c0_22 = arith.constant 0 : index
      %c0_23 = arith.constant 0 : index
      %52 = vector.load %arg11[%c0_22, %c0_23] : memref<8x128xf32, #tpu.memory_space<vmem>>, vector<8x128xf32>
      tpu.vector_store %arg11[%c0_22, %c0_23], %51 {strides = array<i32>} : memref<8x128xf32, #tpu.memory_space<vmem>>, vector<8x128xf32>,
    } else {
    }
    %c0 = arith.constant 0 : index
    %c0_1 = arith.constant 0 : index
    %3 = vector.load %arg11[%c0, %c0_1] : memref<8x128xf32, #tpu.memory_space<vmem>>, vector<8x128xf32>
    %4 = arith.truncf %3 : vector<8x128xf32> to vector<8x128xbf16>
    %c0_2 = arith.constant 0 : index
    %c0_3 = arith.constant 0 : index
    %5 = vector.load %arg4[%c0_2, %c0_3] : memref<128x384xbf16, #tpu.memory_space<vmem>>, vector<128x384xbf16>
    %cst = arith.constant dense<0.000000e+00> : vector<8x384xf32>
    %6 = tpu.matmul %4, %5, %cst {dimension_numbers = #tpu.dot_dimension_numbers<[1], [0], [0], [1], [0, 0, 1, 1], [], []>} : vector<8x128xbf16>, vector<128x384xbf16>, vector<8x384xf32> -> vector<8x384xf32>
    %c2_i32 = arith.constant 2 : i32
    %7 = arith.cmpi sge, %arg1, %c2_i32 : i32
    %8 = arith.extui %7 : i1 to i32
    %c0_i32_4 = arith.constant 0 : i32
    %9 = arith.cmpi ne, %8, %c0_i32_4 : i32
    %10 = scf.if %9 -> (vector<8x128xf32>) {
      %51 = vector.extract_strided_slice %6 {offsets = [0, 256], sizes = [8, 128], strides = [1, 1]} : vector<8x384xf32> to vector<8x128xf32>
      %c0_21 = arith.constant 0 : index
      %c0_22 = arith.constant 0 : index
      %52 = vector.load %arg7[%c0_21, %c0_22] : memref<1x128xf32, #tpu.memory_space<vmem>>, vector<1x128xf32>
      %53 = vector.broadcast %52 : vector<1x128xf32> to vector<8x128xf32>
      %54 = arith.addf %51, %53 : vector<8x128xf32>
      %cst_23 = arith.constant 0.000000e+00 : f32
      %55 = vector.broadcast %cst_23 : f32 to vector<8x128xf32>
      %56 = arith.maximumf %54, %55 : vector<8x128xf32>
      %57 = arith.truncf %56 : vector<8x128xf32> to vector<8x128xbf16>
      %c0_24 = arith.constant 0 : index
      %c0_25 = arith.constant 0 : index
      %58 = vector.load %arg8[%c0_24, %c0_25] : memref<128x128xbf16, #tpu.memory_space<vmem>>, vector<128x128xbf16>
      %cst_26 = arith.constant dense<0.000000e+00> : vector<8x128xf32>
      %59 = tpu.matmul %57, %58, %cst_26 {dimension_numbers = #tpu.dot_dimension_numbers<[1], [0], [0], [1], [0, 0, 1, 1], [], []>} : vector<8x128xbf16>, vector<128x128xbf16>, vector<8x128xf32> -> vector<8x128xf32>
      %c0_27 = arith.constant 0 : index
      %c0_28 = arith.constant 0 : index
      %60 = vector.load %arg9[%c0_27, %c0_28] : memref<1x128xf32, #tpu.memory_space<vmem>>, vector<1x128xf32>
      %61 = vector.broadcast %60 : vector<1x128xf32> to vector<8x128xf32>
      %62 = arith.addf %59, %61 : vector<8x128xf32>
      scf.yield %62 : vector<8x128xf32>
    } else {
      %c0_21 = arith.constant 0 : index
      %c0_22 = arith.constant 0 : index
      %c0_23 = arith.constant 0 : index
      %51 = vector.load %arg2[%c0_21, %c0_22, %c0_23] : memref<1x8x128xf32, #tpu.memory_space<vmem>>, vector<1x8x128xf32>
      %52 = vector.shape_cast %51 : vector<1x8x128xf32> to vector<8x128xf32>
      scf.yield %52 : vector<8x128xf32>
    }
    %c2_i32_5 = arith.constant 2 : i32
    %11 = arith.cmpi sge, %arg1, %c2_i32_5 : i32
    %12 = arith.extui %11 : i1 to i32
    %c0_i32_6 = arith.constant 0 : i32
    %13 = arith.cmpi ne, %12, %c0_i32_6 : i32
    scf.if %13 {
      %c0_21 = arith.constant 0 : index
      %c0_22 = arith.constant 0 : index
      %c0_23 = arith.constant 0 : index
      %51 = vector.load %arg10[%c0_21, %c0_22, %c0_23] : memref<1x8x128xf32, #tpu.memory_space<vmem>>, vector<1x8x128xf32>
      %52 = vector.shape_cast %51 : vector<1x8x128xf32> to vector<8x128xf32>
      %53 = vector.shape_cast %10 : vector<8x128xf32> to vector<1x8x128xf32>
      tpu.vector_store %arg10[%c0_21, %c0_22, %c0_23], %53 {strides = array<i32>} : memref<1x8x128xf32, #tpu.memory_space<vmem>>, vector<1x8x128xf32>,
    } else {
    }
    %cst_7 = arith.constant 0.000000e+00 : f32
    %14 = vector.broadcast %cst_7 : f32 to vector<8x128xf32>
    %15 = arith.maximumf %10, %14 : vector<8x128xf32>
    %16 = arith.truncf %15 : vector<8x128xf32> to vector<8x128xbf16>
    %c0_8 = arith.constant 0 : index
    %c0_9 = arith.constant 0 : index
    %17 = vector.load %arg3[%c0_8, %c0_9] : memref<128x384xbf16, #tpu.memory_space<vmem>>, vector<128x384xbf16>
    %cst_10 = arith.constant dense<0.000000e+00> : vector<8x384xf32>
    %18 = tpu.matmul %16, %17, %cst_10 {dimension_numbers = #tpu.dot_dimension_numbers<[1], [0], [0], [1], [0, 0, 1, 1], [], []>} : vector<8x128xbf16>, vector<128x384xbf16>, vector<8x384xf32> -> vector<8x384xf32>
    %c0_11 = arith.constant 0 : index
    %c0_12 = arith.constant 0 : index
    %19 = vector.load %arg6[%c0_11, %c0_12] : memref<1x384xf32, #tpu.memory_space<vmem>>, vector<1x384xf32>
    %20 = vector.broadcast %19 : vector<1x384xf32> to vector<8x384xf32>
    %21 = arith.addf %18, %20 : vector<8x384xf32>
    %22 = vector.extract_strided_slice %21 {offsets = [0, 0], sizes = [8, 128], strides = [1, 1]} : vector<8x384xf32> to vector<8x128xf32>
    %23 = vector.extract_strided_slice %6 {offsets = [0, 0], sizes = [8, 128], strides = [1, 1]} : vector<8x384xf32> to vector<8x128xf32>
    %24 = arith.addf %22, %23 : vector<8x128xf32>
    %25 = arith.negf %24 : vector<8x128xf32>
    %26 = math.exp %25 : vector<8x128xf32>
    %cst_13 = arith.constant 1.000000e+00 : f32
    %27 = vector.broadcast %cst_13 : f32 to vector<8x128xf32>
    %28 = arith.addf %27, %26 : vector<8x128xf32>
    %29 = arith.divf %27, %28 : vector<8x128xf32>
    %30 = vector.extract_strided_slice %21 {offsets = [0, 128], sizes = [8, 128], strides = [1, 1]} : vector<8x384xf32> to vector<8x128xf32>
    %31 = vector.extract_strided_slice %6 {offsets = [0, 128], sizes = [8, 128], strides = [1, 1]} : vector<8x384xf32> to vector<8x128xf32>
    %32 = arith.addf %30, %31 : vector<8x128xf32>
    %33 = arith.negf %32 : vector<8x128xf32>
    %34 = math.exp %33 : vector<8x128xf32>
    %cst_14 = arith.constant 1.000000e+00 : f32
    %35 = vector.broadcast %cst_14 : f32 to vector<8x128xf32>
    %36 = arith.addf %35, %34 : vector<8x128xf32>
    %37 = arith.divf %35, %36 : vector<8x128xf32>
    %38 = arith.mulf %29, %3 : vector<8x128xf32>
    %39 = arith.truncf %38 : vector<8x128xf32> to vector<8x128xbf16>
    %40 = vector.extract_strided_slice %21 {offsets = [0, 256], sizes = [8, 128], strides = [1, 1]} : vector<8x384xf32> to vector<8x128xf32>
    %c0_15 = arith.constant 0 : index
    %c0_16 = arith.constant 0 : index
    %41 = vector.load %arg5[%c0_15, %c0_16] : memref<128x128xbf16, #tpu.memory_space<vmem>>, vector<128x128xbf16>
    %cst_17 = arith.constant dense<0.000000e+00> : vector<8x128xf32>
    %42 = tpu.matmul %39, %41, %cst_17 {dimension_numbers = #tpu.dot_dimension_numbers<[1], [0], [0], [1], [0, 0, 1, 1], [], []>} : vector<8x128xbf16>, vector<128x128xbf16>, vector<8x128xf32> -> vector<8x128xf32>
    %43 = arith.addf %40, %42 : vector<8x128xf32>
    %44 = math.tanh %43 : vector<8x128xf32>
    %cst_18 = arith.constant 1.000000e+00 : f32
    %45 = vector.broadcast %cst_18 : f32 to vector<8x128xf32>
    %46 = arith.subf %45, %37 : vector<8x128xf32>
    %47 = arith.mulf %3, %46 : vector<8x128xf32>
    %48 = arith.mulf %44, %37 : vector<8x128xf32>
    %49 = arith.addf %47, %48 : vector<8x128xf32>
    %c0_19 = arith.constant 0 : index
    %c0_20 = arith.constant 0 : index
    %50 = vector.load %arg11[%c0_19, %c0_20] : memref<8x128xf32, #tpu.memory_space<vmem>>, vector<8x128xf32>
    tpu.vector_store %arg11[%c0_19, %c0_20], %49 {strides = array<i32>} : memref<8x128xf32, #tpu.memory_space<vmem>>, vector<8x128xf32>,
    return
  }
  func.func @transform_0(%arg0: i32, %arg1: i32) -> (i32, i32, i32) {
    %c1_i32 = arith.constant 1 : i32
    %0 = arith.minsi %arg1, %c1_i32 : i32
    %c0_i32 = arith.constant 0 : i32
    %c0_i32_0 = arith.constant 0 : i32
    return %0, %arg0, %c0_i32 : i32, i32, i32
  }
  func.func @transform_1(%arg0: i32, %arg1: i32) -> (i32, i32) {
    %c0_i32 = arith.constant 0 : i32
    %c0_i32_0 = arith.constant 0 : i32
    %c0_i32_1 = arith.constant 0 : i32
    return %c0_i32, %c0_i32_0 : i32, i32
  }
  func.func @transform_2(%arg0: i32, %arg1: i32) -> (i32, i32) {
    %c0_i32 = arith.constant 0 : i32
    %c0_i32_0 = arith.constant 0 : i32
    %c0_i32_1 = arith.constant 0 : i32
    return %c0_i32, %c0_i32_0 : i32, i32
  }
  func.func @transform_3(%arg0: i32, %arg1: i32) -> (i32, i32) {
    %c0_i32 = arith.constant 0 : i32
    %c0_i32_0 = arith.constant 0 : i32
    %c0_i32_1 = arith.constant 0 : i32
    return %c0_i32, %c0_i32_0 : i32, i32
  }
  func.func @transform_4(%arg0: i32, %arg1: i32) -> (i32, i32) {
    %c0_i32 = arith.constant 0 : i32
    %c0_i32_0 = arith.constant 0 : i32
    %c0_i32_1 = arith.constant 0 : i32
    return %c0_i32, %c0_i32_0 : i32, i32
  }
  func.func @transform_5(%arg0: i32, %arg1: i32) -> (i32, i32) {
    %c0_i32 = arith.constant 0 : i32
    %c0_i32_0 = arith.constant 0 : i32
    %c0_i32_1 = arith.constant 0 : i32
    return %c0_i32, %c0_i32_0 : i32, i32
  }
  func.func @transform_6(%arg0: i32, %arg1: i32) -> (i32, i32) {
    %c0_i32 = arith.constant 0 : i32
    %c0_i32_0 = arith.constant 0 : i32
    %c0_i32_1 = arith.constant 0 : i32
    return %c0_i32, %c0_i32_0 : i32, i32
  }
  func.func @transform_7(%arg0: i32, %arg1: i32) -> (i32, i32) {
    %c0_i32 = arith.constant 0 : i32
    %c0_i32_0 = arith.constant 0 : i32
    %c0_i32_1 = arith.constant 0 : i32
    return %c0_i32, %c0_i32_0 : i32, i32
  }
  func.func @transform_8(%arg0: i32, %arg1: i32) -> (i32, i32, i32) {
    %c2_i32 = arith.constant 2 : i32
    %0 = arith.subi %arg1, %c2_i32 : i32
    %c0_i32 = arith.constant 0 : i32
    %1 = arith.maxsi %0, %c0_i32 : i32
    %c0_i32_0 = arith.constant 0 : i32
    %c0_i32_1 = arith.constant 0 : i32
    return %1, %arg0, %c0_i32_0 : i32, i32, i32
  }
}

module attributes {stable_mosaic.version = 11 : i64} {
  func.func @_similarity_kernel(%arg0: i32, %arg1: i32, %arg2: memref<128x128xbf16, #tpu.memory_space<vmem>>, %arg3: memref<128x128xbf16, #tpu.memory_space<vmem>>, %arg4: memref<128x128xf32, #tpu.memory_space<vmem>>) attributes {dimension_semantics = [#tpu.dimension_semantics<parallel>, #tpu.dimension_semantics<parallel>], iteration_bounds = array<i64: 1, 1>, scalar_prefetch = 0 : i64, scratch_operands = 0 : i64, tpu.core_type = #tpu.core_type<tc>, window_params = [{transform_indices = @transform_0, window_bounds = array<i64: 128, 128>}, {transform_indices = @transform_1, window_bounds = array<i64: 128, 128>}, {transform_indices = @transform_2, window_bounds = array<i64: 128, 128>}]} {
    %c0 = arith.constant 0 : index
    %c0_0 = arith.constant 0 : index
    %0 = vector.load %arg2[%c0, %c0_0] : memref<128x128xbf16, #tpu.memory_space<vmem>>, vector<128x128xbf16>
    %c0_1 = arith.constant 0 : index
    %c0_2 = arith.constant 0 : index
    %1 = vector.load %arg3[%c0_1, %c0_2] : memref<128x128xbf16, #tpu.memory_space<vmem>>, vector<128x128xbf16>
    %cst = arith.constant dense<0.000000e+00> : vector<128x128xf32>
    %2 = tpu.matmul %0, %1, %cst {dimension_numbers = #tpu.dot_dimension_numbers<[1], [1], [0], [0], [0, 0, 1, 0], [], []>} : vector<128x128xbf16>, vector<128x128xbf16>, vector<128x128xf32> -> vector<128x128xf32>
    %c0_3 = arith.constant 0 : index
    %c0_4 = arith.constant 0 : index
    %3 = vector.load %arg4[%c0_3, %c0_4] : memref<128x128xf32, #tpu.memory_space<vmem>>, vector<128x128xf32>
    tpu.vector_store %arg4[%c0_3, %c0_4], %2 {strides = array<i32>} : memref<128x128xf32, #tpu.memory_space<vmem>>, vector<128x128xf32>,
    return
  }
  func.func @transform_0(%arg0: i32, %arg1: i32) -> (i32, i32) {
    %c0_i32 = arith.constant 0 : i32
    %c0_i32_0 = arith.constant 0 : i32
    return %arg0, %c0_i32 : i32, i32
  }
  func.func @transform_1(%arg0: i32, %arg1: i32) -> (i32, i32) {
    %c0_i32 = arith.constant 0 : i32
    %c0_i32_0 = arith.constant 0 : i32
    return %arg1, %c0_i32 : i32, i32
  }
  func.func @transform_2(%arg0: i32, %arg1: i32) -> (i32, i32) {
    %c0_i32 = arith.constant 0 : i32
    return %arg0, %arg1 : i32, i32
  }
}

</mosaic_0001>

<llo_original>
// kernel: dpc_rnn_score.2
$region0: #{dpc_rnn_score.2}
  #allocation0 [shape = 'u32[]', space=smem, size = 0x4, offset = 0x4, fixed_abs, tag = 'smem constant byte address 0x4 - core index']
  #allocation1 [shape = 'u32[144,128]{1,0:T(1,128)}', space=vmem, size = 0x12000, scoped, tag = 'internal scratch']
  #allocation2 [shape = 'f32[8,128]{1,0:T(8,128)}', space=vmem, size = 0x1000, scoped, tag = 'scratch operand']
  %s0 = inlined_call_operand.vmem [shape: f32[2,8,128], index: 0, kind: input, shape index: {}]
  %s1 = inlined_call_operand.vmem [shape: bf16[128,384], index: 1, kind: input, shape index: {}]
  %s2 = inlined_call_operand.vmem [shape: bf16[128,384], index: 2, kind: input, shape index: {}]
  %s3 = inlined_call_operand.vmem [shape: bf16[128,128], index: 3, kind: input, shape index: {}]
  %s4 = inlined_call_operand.vmem [shape: f32[1,384], index: 4, kind: input, shape index: {}]
  %s5 = inlined_call_operand.vmem [shape: f32[1,128], index: 5, kind: input, shape index: {}]
  %s6 = inlined_call_operand.vmem [shape: bf16[128,128], index: 6, kind: input, shape index: {}]
  %s7 = inlined_call_operand.vmem [shape: f32[1,128], index: 7, kind: input, shape index: {}]
  %s8 = inlined_call_operand.vmem [shape: f32[2,8,128], index: 8, kind: output, shape index: {}]
  %s9 = sld [smem:[#allocation0]]
  $region77: #{dpc_rnn_score.2} parent=0
    _
  %s11 = ssub.s32 1, %s9
  %s12 = scalar_select 0, %s11, %s9
  loop: start=0, step=1, limit=6
  $region2: #{dpc_rnn_score.2} parent=0 // loop_pre_header
    _
  $region3: #{dpc_rnn_score.2} parent=0 // loop_header
    %s14 = sphi 0, %s18
    %p15 = scmp.ge.s32.totalorder %s14, 6
    %s21 = sphi 0, %s33
    %s22 = sphi 0, %s29
    %s23 = sphi 0, %s21
    %s24 = sphi 0, %s22
    %s25 = sphi 0, %s23
    %s26 = sphi 0, %s24
    %s42 = sphi 0, %s44
    %s45 = sphi 0, %s42
    %s46 = sphi 0, %s45
    %s62 = sphi 0, %s46
    %s66 = sphi 0, %s66
    %s68 = sphi 0, %s66
    %s69 = sphi 0, %s68
    %s83 = sphi 0, %s69
    %s87 = sphi 0, %s87
    %s89 = sphi 0, %s87
    %s90 = sphi 0, %s89
    %s104 = sphi 0, %s90
    %s108 = sphi 0, %s108
    %s110 = sphi 0, %s108
    %s111 = sphi 0, %s110
    %s125 = sphi 0, %s111
    %s129 = sphi 0, %s129
    %s131 = sphi 0, %s129
    %s132 = sphi 0, %s131
    %s146 = sphi 0, %s132
    %s150 = sphi 0, %s150
    %s152 = sphi 0, %s150
    %s153 = sphi 0, %s152
    %s167 = sphi 0, %s153
    %s171 = sphi 0, %s171
    %s173 = sphi 0, %s171
    %s174 = sphi 0, %s173
    %s188 = sphi 0, %s174
    %s192 = sphi 0, %s192
    %s194 = sphi 0, %s192
    %s195 = sphi 0, %s194
    %s209 = sphi 0, %s195
    %s223 = sphi 0, %s225
    %s226 = sphi 0, %s223
    %s227 = sphi 0, %s226
    %s243 = sphi 0, %s227
  $region4: #{dpc_rnn_score.2} parent=0 // loop_header_branch
    %17 = sbr.rel (%p15) target = $region8
  $region5: #{dpc_rnn_score.2} parent=0 // loop_body
    %s19 = ssub.s32 %s14, 1
    %s20 = ssub.s32 %s14, 2
    %s27 = sadd.s32 1, %s22
    %p28 = scmp.ge.s32.totalorder %s27, 4
    %s29 = scalar_select %p28, 0, %s27
    %s30 = sadd.s32 1, %s21
    %s31 = scalar_select %p28, %s30, %s21
    %p32 = scmp.ge.s32.totalorder %s31, 1
    %s33 = scalar_select %p32, 0, %s31
    %p34 = scmp.lt.s32.totalorder %s22, 1
    %s35 = scalar_select %p34, %s22, 1
    %p36 = scmp.lt.s32.totalorder %s29, 1
    %s37 = scalar_select %p36, %s29, 1
    %s38 = ssub.s32 %s35, %s37
    %s39 = ssub.s32 %s21, %s33
    %s40 = sor.u32 %s38, %s39
    %p41 = scmp.eq.s32.totalorder %s40, 0
    %s43 = sadd.s32 %s42, 1
    %s44 = scalar_select %p41, %s42, %s43
    %p47 = pneg %p41
    %p48 = scmp.eq.s32.totalorder %s14, 3
    %p49 = por %p47, %p48
    %p50 = scmp.ne.s32.totalorder %s42, %s45
    %p51 = scmp.eq.s32.totalorder %s14, 0
    %p52 = por %p50, %p51
    %p53 = scmp.ne.s32.totalorder %s42, %s45
    %p54 = scmp.eq.s32.totalorder %s19, 3
    %p55 = por %p53, %p54
    %p56 = scmp.ne.s32.totalorder %s45, %s46
    %p57 = scmp.eq.s32.totalorder %s19, 0
    %p58 = por %p56, %p57
    %p59 = scmp.ne.s32.totalorder %s45, %s46
    %p60 = scmp.eq.s32.totalorder %s20, 3
    %p61 = por %p59, %p60
    %p63 = scmp.ne.s32.totalorder %s46, %s62
    %p64 = scmp.eq.s32.totalorder %s20, 0
    %p65 = por %p63, %p64
    %s67 = sadd.s32 %s66, 1
    %p70 = scmp.eq.s32.totalorder %s14, 3
    %p71 = scmp.ne.s32.totalorder %s66, %s68
    %p72 = scmp.eq.s32.totalorder %s14, 0
    %p73 = por %p71, %p72
    %p74 = scmp.ne.s32.totalorder %s66, %s68
    %p75 = scmp.eq.s32.totalorder %s19, 3
    %p76 = por %p74, %p75
    %p77 = scmp.ne.s32.totalorder %s68, %s69
    %p78 = scmp.eq.s32.totalorder %s19, 0
    %p79 = por %p77, %p78
    %p80 = scmp.ne.s32.totalorder %s68, %s69
    %p81 = scmp.eq.s32.totalorder %s20, 3
    %p82 = por %p80, %p81
    %p84 = scmp.ne.s32.totalorder %s69, %s83
    %p85 = scmp.eq.s32.totalorder %s20, 0
    %p86 = por %p84, %p85
    %s88 = sadd.s32 %s87, 1
    %p91 = scmp.eq.s32.totalorder %s14, 3
    %p92 = scmp.ne.s32.totalorder %s87, %s89
    %p93 = scmp.eq.s32.totalorder %s14, 0
    %p94 = por %p92, %p93
    %p95 = scmp.ne.s32.totalorder %s87, %s89
    %p96 = scmp.eq.s32.totalorder %s19, 3
    %p97 = por %p95, %p96
    %p98 = scmp.ne.s32.totalorder %s89, %s90
    %p99 = scmp.eq.s32.totalorder %s19, 0
    %p100 = por %p98, %p99
    %p101 = scmp.ne.s32.totalorder %s89, %s90
    %p102 = scmp.eq.s32.totalorder %s20, 3
    %p103 = por %p101, %p102
    %p105 = scmp.ne.s32.totalorder %s90, %s104
    %p106 = scmp.eq.s32.totalorder %s20, 0
    %p107 = por %p105, %p106
    %s109 = sadd.s32 %s108, 1
    %p112 = scmp.eq.s32.totalorder %s14, 3
    %p113 = scmp.ne.s32.totalorder %s108, %s110
    %p114 = scmp.eq.s32.totalorder %s14, 0
    %p115 = por %p113, %p114
    %p116 = scmp.ne.s32.totalorder %s108, %s110
    %p117 = scmp.eq.s32.totalorder %s19, 3
    %p118 = por %p116, %p117
    %p119 = scmp.ne.s32.totalorder %s110, %s111
    %p120 = scmp.eq.s32.totalorder %s19, 0
    %p121 = por %p119, %p120
    %p122 = scmp.ne.s32.totalorder %s110, %s111
    %p123 = scmp.eq.s32.totalorder %s20, 3
    %p124 = por %p122, %p123
    %p126 = scmp.ne.s32.totalorder %s111, %s125
    %p127 = scmp.eq.s32.totalorder %s20, 0
    %p128 = por %p126, %p127
    %s130 = sadd.s32 %s129, 1
    %p133 = scmp.eq.s32.totalorder %s14, 3
    %p134 = scmp.ne.s32.totalorder %s129, %s131
    %p135 = scmp.eq.s32.totalorder %s14, 0
    %p136 = por %p134, %p135
    %p137 = scmp.ne.s32.totalorder %s129, %s131
    %p138 = scmp.eq.s32.totalorder %s19, 3
    %p139 = por %p137, %p138
    %p140 = scmp.ne.s32.totalorder %s131, %s132
    %p141 = scmp.eq.s32.totalorder %s19, 0
    %p142 = por %p140, %p141
    %p143 = scmp.ne.s32.totalorder %s131, %s132
    %p144 = scmp.eq.s32.totalorder %s20, 3
    %p145 = por %p143, %p144
    %p147 = scmp.ne.s32.totalorder %s132, %s146
    %p148 = scmp.eq.s32.totalorder %s20, 0
    %p149 = por %p147, %p148
    %s151 = sadd.s32 %s150, 1
    %p154 = scmp.eq.s32.totalorder %s14, 3
    %p155 = scmp.ne.s32.totalorder %s150, %s152
    %p156 = scmp.eq.s32.totalorder %s14, 0
    %p157 = por %p155, %p156
    %p158 = scmp.ne.s32.totalorder %s150, %s152
    %p159 = scmp.eq.s32.totalorder %s19, 3
    %p160 = por %p158, %p159
    %p161 = scmp.ne.s32.totalorder %s152, %s153
    %p162 = scmp.eq.s32.totalorder %s19, 0
    %p163 = por %p161, %p162
    %p164 = scmp.ne.s32.totalorder %s152, %s153
    %p165 = scmp.eq.s32.totalorder %s20, 3
    %p166 = por %p164, %p165
    %p168 = scmp.ne.s32.totalorder %s153, %s167
    %p169 = scmp.eq.s32.totalorder %s20, 0
    %p170 = por %p168, %p169
    %s172 = sadd.s32 %s171, 1
    %p175 = scmp.eq.s32.totalorder %s14, 3
    %p176 = scmp.ne.s32.totalorder %s171, %s173
    %p177 = scmp.eq.s32.totalorder %s14, 0
    %p178 = por %p176, %p177
    %p179 = scmp.ne.s32.totalorder %s171, %s173
    %p180 = scmp.eq.s32.totalorder %s19, 3
    %p181 = por %p179, %p180
    %p182 = scmp.ne.s32.totalorder %s173, %s174
    %p183 = scmp.eq.s32.totalorder %s19, 0
    %p184 = por %p182, %p183
    %p185 = scmp.ne.s32.totalorder %s173, %s174
    %p186 = scmp.eq.s32.totalorder %s20, 3
    %p187 = por %p185, %p186
    %p189 = scmp.ne.s32.totalorder %s174, %s188
    %p190 = scmp.eq.s32.totalorder %s20, 0
    %p191 = por %p189, %p190
    %s193 = sadd.s32 %s192, 1
    %p196 = scmp.eq.s32.totalorder %s14, 3
    %p197 = scmp.ne.s32.totalorder %s192, %s194
    %p198 = scmp.eq.s32.totalorder %s14, 0
    %p199 = por %p197, %p198
    %p200 = scmp.ne.s32.totalorder %s192, %s194
    %p201 = scmp.eq.s32.totalorder %s19, 3
    %p202 = por %p200, %p201
    %p203 = scmp.ne.s32.totalorder %s194, %s195
    %p204 = scmp.eq.s32.totalorder %s19, 0
    %p205 = por %p203, %p204
    %p206 = scmp.ne.s32.totalorder %s194, %s195
    %p207 = scmp.eq.s32.totalorder %s20, 3
    %p208 = por %p206, %p207
    %p210 = scmp.ne.s32.totalorder %s195, %s209
    %p211 = scmp.eq.s32.totalorder %s20, 0
    %p212 = por %p210, %p211
    %s213 = ssub.s32 %s22, 2
    %p214 = scmp.gt.s32.totalorder %s213, 0
    %s215 = scalar_select %p214, %s213, 0
    %s216 = ssub.s32 %s29, 2
    %p217 = scmp.gt.s32.totalorder %s216, 0
    %s218 = scalar_select %p217, %s216, 0
    %s219 = ssub.s32 %s215, %s218
    %s220 = ssub.s32 %s21, %s33
    %s221 = sor.u32 %s219, %s220
    %p222 = scmp.eq.s32.totalorder %s221, 0
    %s224 = sadd.s32 %s223, 1
    %s225 = scalar_select %p222, %s223, %s224
    %p228 = pneg %p222
    %p229 = scmp.eq.s32.totalorder %s14, 3
    %p230 = por %p228, %p229
    %p231 = scmp.ne.s32.totalorder %s223, %s226
    %p232 = scmp.eq.s32.totalorder %s14, 0
    %p233 = por %p231, %p232
    %p234 = scmp.ne.s32.totalorder %s223, %s226
    %p235 = scmp.eq.s32.totalorder %s19, 3
    %p236 = por %p234, %p235
    %p237 = scmp.ne.s32.totalorder %s226, %s227
    %p238 = scmp.eq.s32.totalorder %s19, 0
    %p239 = por %p237, %p238
    %p240 = scmp.ne.s32.totalorder %s226, %s227
    %p241 = scmp.eq.s32.totalorder %s20, 3
    %p242 = por %p240, %p241
    %p244 = scmp.ne.s32.totalorder %s227, %s243
    %p245 = scmp.eq.s32.totalorder %s20, 0
    %p246 = por %p244, %p245
    %p247 = scmp.le.s32.totalorder 1, %s14
    %p248 = scmp.lt.s32.totalorder %s14, 5
    %p249 = pnand %p247, %p248
    %p250 = pneg %p249
    // Predicated region
    $region9: #{dpc_rnn_score.2} parent=5 // pred_check
      _
    $region10: #{dpc_rnn_score.2} parent=5 // pred_check_branch
      %252 = sbr.rel (%p249) target = $region12
    $region11: #{dpc_rnn_score.2} parent=5 // pred_region
      %s253 = ssub.s32 %s14, 1
      // Predicated region
      $region13: #{dpc_rnn_score.2} parent=11 // pred_check
        %p254 = pneg %p79
      $region14: #{dpc_rnn_score.2} parent=11 // pred_check_branch
        %256 = sbr.rel (%p254) target = $region16
      $region15: #{dpc_rnn_score.2} parent=11 // pred_region
        _
      $region16: #{dpc_rnn_score.2} parent=11 // pred_fallthru
        _
      // Predicated region
      $region17: #{dpc_rnn_score.2} parent=11 // pred_check
        %p257 = pneg %p100
      $region18: #{dpc_rnn_score.2} parent=11 // pred_check_branch
        %259 = sbr.rel (%p257) target = $region20
      $region19: #{dpc_rnn_score.2} parent=11 // pred_region
        _
      $region20: #{dpc_rnn_score.2} parent=11 // pred_fallthru
        _
      // Predicated region
      $region21: #{dpc_rnn_score.2} parent=11 // pred_check
        %p260 = pneg %p121
      $region22: #{dpc_rnn_score.2} parent=11 // pred_check_branch
        %262 = sbr.rel (%p260) target = $region24
      $region23: #{dpc_rnn_score.2} parent=11 // pred_region
        _
      $region24: #{dpc_rnn_score.2} parent=11 // pred_fallthru
        _
      // Predicated region
      $region25: #{dpc_rnn_score.2} parent=11 // pred_check
        %p263 = pneg %p142
      $region26: #{dpc_rnn_score.2} parent=11 // pred_check_branch
        %265 = sbr.rel (%p263) target = $region28
      $region27: #{dpc_rnn_score.2} parent=11 // pred_region
        _
      $region28: #{dpc_rnn_score.2} parent=11 // pred_fallthru
        _
      // Predicated region
      $region29: #{dpc_rnn_score.2} parent=11 // pred_check
        %p266 = pneg %p163
      $region30: #{dpc_rnn_score.2} parent=11 // pred_check_branch
        %268 = sbr.rel (%p266) target = $region32
      $region31: #{dpc_rnn_score.2} parent=11 // pred_region
        _
      $region32: #{dpc_rnn_score.2} parent=11 // pred_fallthru
        _
      // Predicated region
      $region33: #{dpc_rnn_score.2} parent=11 // pred_check
        %p269 = pneg %p184
      $region34: #{dpc_rnn_score.2} parent=11 // pred_check_branch
        %271 = sbr.rel (%p269) target = $region36
      $region35: #{dpc_rnn_score.2} parent=11 // pred_region
        _
      $region36: #{dpc_rnn_score.2} parent=11 // pred_fallthru
        _
      // Predicated region
      $region37: #{dpc_rnn_score.2} parent=11 // pred_check
        %p272 = pneg %p205
      $region38: #{dpc_rnn_score.2} parent=11 // pred_check_branch
        %274 = sbr.rel (%p272) target = $region40
      $region39: #{dpc_rnn_score.2} parent=11 // pred_region
        _
      $region40: #{dpc_rnn_score.2} parent=11 // pred_fallthru
        _
    $region12: #{dpc_rnn_score.2} parent=5 // pred_fallthru
      _
    %p275 = scmp.lt.s32.totalorder %s14, 4
    // Predicated region
    $region41: #{dpc_rnn_score.2} parent=5 // pred_check
      %p276 = pneg %p275
    $region42: #{dpc_rnn_score.2} parent=5 // pred_check_branch
      %278 = sbr.rel (%p276) target = $region44
    $region43: #{dpc_rnn_score.2} parent=5 // pred_region
      // Predicated region
      $region45: #{dpc_rnn_score.2} parent=43 // pred_check
        %p279 = pneg %p52
      $region46: #{dpc_rnn_score.2} parent=43 // pred_check_branch
        %281 = sbr.rel (%p279) target = $region48
      $region47: #{dpc_rnn_score.2} parent=43 // pred_region
        %p282 = scmp.lt.s32.totalorder %s22, 1
        %s283 = scalar_select %p282, %s22, 1
        %p284 = scmp.lt.s32.totalorder %s283, 1
        %s285 = scalar_select %p284, %s283, 1
        %p286 = scmp.lt.s32.totalorder %s21, 0
        %s287 = scalar_select %p286, %s21, 0
        %s288 = sadd.s32 %s287, %s285
        %s289 = smul.addr %s288, 8
        %s290 = scalar_lea.vmem %s0, %s289
        %p291 = scmp.lt.s32.totalorder %s22, 1
        %s292 = scalar_select %p291, %s22, 1
      $region48: #{dpc_rnn_score.2} parent=43 // pred_fallthru
        _
    $region44: #{dpc_rnn_score.2} parent=5 // pred_fallthru
      _
    %p293 = scmp.le.s32.totalorder 1, %s14
    %p294 = scmp.lt.s32.totalorder %s14, 5
    %p295 = pnand %p293, %p294
    %p296 = pneg %p295
    // Predicated region
    $region49: #{dpc_rnn_score.2} parent=5 // pred_check
      _
    $region50: #{dpc_rnn_score.2} parent=5 // pred_check_branch
      %298 = sbr.rel (%p295) target = $region52
    $region51: #{dpc_rnn_score.2} parent=5 // pred_region
      %s299 = ssub.s32 %s14, 1
      %p300 = scmp.lt.s32.totalorder %s24, 1
      %s301 = scalar_select %p300, %s24, 1
      %p302 = scmp.lt.s32.totalorder %s301, 1
      %s303 = scalar_select %p302, %s301, 1
      %p304 = scmp.lt.s32.totalorder %s23, 0
      %s305 = scalar_select %p304, %s23, 0
      %s306 = sadd.s32 %s305, %s303
      %s307 = smul.addr %s306, 8
      %s308 = scalar_lea.vmem %s0, %s307
      %p309 = pneg %p58
      %p310 = pneg %p55
      %p311 = pneg %p79
      %p312 = pneg %p76
      %p313 = pneg %p100
      %p314 = pneg %p97
      %p315 = pneg %p121
      %p316 = pneg %p118
      %p317 = pneg %p142
      %p318 = pneg %p139
      %p319 = pneg %p163
      %p320 = pneg %p160
      %p321 = pneg %p184
      %p322 = pneg %p181
      %p323 = pneg %p205
      %p324 = pneg %p202
      %p325 = pneg %p239
      %p326 = pneg %p236
      %s327 = ssub.s32 %s24, 2
      %p328 = scmp.gt.s32.totalorder %s327, 0
      %s329 = scalar_select %p328, %s327, 0
      %p330 = scmp.lt.s32.totalorder %s329, 1
      %s331 = scalar_select %p330, %s329, 1
      %p332 = scmp.lt.s32.totalorder %s23, 0
      %s333 = scalar_select %p332, %s23, 0
      %s334 = sadd.s32 %s333, %s331
      %s335 = smul.addr %s334, 8
      %s336 = scalar_lea.vmem %s8, %s335
      %p337 = scmp.lt.s32.totalorder %s24, 1
      %s338 = scalar_select %p337, %s24, 1
      %p339 = scmp.lt.s32.totalorder %s338, 1
      %s340 = scalar_select %p339, %s338, 1
      %p341 = scmp.lt.s32.totalorder %s23, 0
      %s342 = scalar_select %p341, %s23, 0
      %s343 = sadd.s32 %s342, %s340
      %s344 = smul.addr %s343, 8
      %s345 = scalar_lea.vmem %s0, %s344
      %p346 = scmp.lt.s32.totalorder %s24, 1
      %s347 = scalar_select %p346, %s24, 1
      %s348 = ssub.s32 %s24, 2
      %p349 = scmp.gt.s32.totalorder %s348, 0
      %s350 = scalar_select %p349, %s348, 0
      %p351 = scmp.lt.s32.totalorder %s350, 1
      %s352 = scalar_select %p351, %s350, 1
      %p353 = scmp.lt.s32.totalorder %s23, 0
      %s354 = scalar_select %p353, %s23, 0
      %s355 = sadd.s32 %s354, %s352
      %s356 = smul.addr %s355, 8
      %s357 = scalar_lea.vmem %s8, %s356
      %s358 = ssub.s32 %s24, 2
      %p359 = scmp.gt.s32.totalorder %s358, 0
      %s360 = scalar_select %p359, %s358, 0
      %p362 = scmp.eq.s32.totalorder %s24, 0
      // Predicated region
      $region53: #{dpc_rnn_score.2} parent=51 // pred_check
        %p363 = pneg %p362
      $region54: #{dpc_rnn_score.2} parent=51 // pred_check_branch
        %365 = sbr.rel (%p363) target = $region56
      $region55: #{dpc_rnn_score.2} parent=51 // pred_region
        %366 = vst [vmem:[#allocation2] sm:$0xff] 0.0
      $region56: #{dpc_rnn_score.2} parent=51 // pred_fallthru
        _
      %v367 = vld [vmem:[#allocation2] sm:$0xff]
      %v368 = vpack.c.bf16 %v367, %v367
      %v369 = vld [vmem:[%s2] sm:$0xff]
      %v370 = vld [vmem:[%s2 + $0x8] sm:$0xf]
      %v371 = vld [vmem:[%s2 + $0xc] sm:$0xff]
      %v372 = vld [vmem:[%s2 + $0x14] sm:$0xf]
      %v373 = vld [vmem:[%s2 + $0x18] sm:$0xff]
      %v374 = vld [vmem:[%s2 + $0x20] sm:$0xf]
      %v375 = vld [vmem:[%s2 + $0x24] sm:$0xff]
      %v376 = vld [vmem:[%s2 + $0x2c] sm:$0xf]
      %v377 = vld [vmem:[%s2 + $0x30] sm:$0xff]
      %v378 = vld [vmem:[%s2 + $0x38] sm:$0xf]
      %v379 = vld [vmem:[%s2 + $0x3c] sm:$0xff]
      %v380 = vld [vmem:[%s2 + $0x44] sm:$0xf]
      %v381 = vld [vmem:[%s2 + $0x48] sm:$0xff]
      %v382 = vld [vmem:[%s2 + $0x50] sm:$0xf]
      %v383 = vld [vmem:[%s2 + $0x54] sm:$0xff]
      %v384 = vld [vmem:[%s2 + $0x5c] sm:$0xf]
      %v385 = vld [vmem:[%s2 + $0x60] sm:$0xff]
      %v386 = vld [vmem:[%s2 + $0x68] sm:$0xf]
      %v387 = vld [vmem:[%s2 + $0x6c] sm:$0xff]
      %v388 = vld [vmem:[%s2 + $0x74] sm:$0xf]
      %v389 = vld [vmem:[%s2 + $0x78] sm:$0xff]
      %v390 = vld [vmem:[%s2 + $0x80] sm:$0xf]
      %v391 = vld [vmem:[%s2 + $0x84] sm:$0xff]
      %v392 = vld [vmem:[%s2 + $0x8c] sm:$0xf]
      %v393 = vld [vmem:[%s2 + $0x90] sm:$0xff]
      %v394 = vld [vmem:[%s2 + $0x98] sm:$0xf]
      %v395 = vld [vmem:[%s2 + $0x9c] sm:$0xff]
      %v396 = vld [vmem:[%s2 + $0xa4] sm:$0xf]
      %v397 = vld [vmem:[%s2 + $0xa8] sm:$0xff]
      %v398 = vld [vmem:[%s2 + $0xb0] sm:$0xf]
      %v399 = vld [vmem:[%s2 + $0xb4] sm:$0xff]
      %v400 = vld [vmem:[%s2 + $0xbc] sm:$0xf]
      %v433 = vunpack.c.l.b16 %v369
      %v434 = vunpack.c.h.b16 %v369
      %v435 = vunpack.c.l.b16 %v370
      %v436 = vunpack.c.l.b16 %v371
      %v437 = vunpack.c.h.b16 %v371
      %v438 = vunpack.c.l.b16 %v372
      %v439 = vunpack.c.l.b16 %v373
      %v440 = vunpack.c.h.b16 %v373
      %v441 = vunpack.c.l.b16 %v374
      %v442 = vunpack.c.l.b16 %v375
      %v443 = vunpack.c.h.b16 %v375
      %v444 = vunpack.c.l.b16 %v376
      %v445 = vunpack.c.l.b16 %v377
      %v446 = vunpack.c.h.b16 %v377
      %v447 = vunpack.c.l.b16 %v378
      %v448 = vunpack.c.l.b16 %v379
      %v449 = vunpack.c.h.b16 %v379
      %v450 = vunpack.c.l.b16 %v380
      %v451 = vunpack.c.l.b16 %v381
      %v452 = vunpack.c.h.b16 %v381
      %v453 = vunpack.c.l.b16 %v382
      %v454 = vunpack.c.l.b16 %v383
      %v455 = vunpack.c.h.b16 %v383
      %v456 = vunpack.c.l.b16 %v384
      %v457 = vunpack.c.l.b16 %v385
      %v458 = vunpack.c.h.b16 %v385
      %v459 = vunpack.c.l.b16 %v386
      %v460 = vunpack.c.l.b16 %v387
      %v461 = vunpack.c.h.b16 %v387
      %v462 = vunpack.c.l.b16 %v388
      %v463 = vunpack.c.l.b16 %v389
      %v464 = vunpack.c.h.b16 %v389
      %v465 = vunpack.c.l.b16 %v390
      %v466 = vunpack.c.l.b16 %v391
      %v467 = vunpack.c.h.b16 %v391
      %v468 = vunpack.c.l.b16 %v392
      %v469 = vunpack.c.l.b16 %v393
      %v470 = vunpack.c.h.b16 %v393
      %v471 = vunpack.c.l.b16 %v394
      %v472 = vunpack.c.l.b16 %v395
      %v473 = vunpack.c.h.b16 %v395
      %v474 = vunpack.c.l.b16 %v396
      %v475 = vunpack.c.l.b16 %v397
      %v476 = vunpack.c.h.b16 %v397
      %v477 = vunpack.c.l.b16 %v398
      %v478 = vunpack.c.l.b16 %v399
      %v479 = vunpack.c.h.b16 %v399
      %v480 = vunpack.c.l.b16 %v400
      %v481 = vpack.c.b16 %v436, %v433
      %v482 = vpack.c.b16 %v437, %v434
      %v483 = vpack.c.b16 %v438, %v435
      %v484 = vpack.c.b16 %v442, %v439
      %v485 = vpack.c.b16 %v443, %v440
      %v486 = vpack.c.b16 %v444, %v441
      %v487 = vpack.c.b16 %v448, %v445
      %v488 = vpack.c.b16 %v449, %v446
      %v489 = vpack.c.b16 %v450, %v447
      %v490 = vpack.c.b16 %v454, %v451
      %v491 = vpack.c.b16 %v455, %v452
      %v492 = vpack.c.b16 %v456, %v453
      %v493 = vpack.c.b16 %v460, %v457
      %v494 = vpack.c.b16 %v461, %v458
      %v495 = vpack.c.b16 %v462, %v459
      %v496 = vpack.c.b16 %v466, %v463
      %v497 = vpack.c.b16 %v467, %v464
      %v498 = vpack.c.b16 %v468, %v465
      %v499 = vpack.c.b16 %v472, %v469
      %v500 = vpack.c.b16 %v473, %v470
      %v501 = vpack.c.b16 %v474, %v471
      %v502 = vpack.c.b16 %v478, %v475
      %v503 = vpack.c.b16 %v479, %v476
      %v504 = vpack.c.b16 %v480, %v477
      %529 = vmatprep.subr.bf16.mxu0 %v482
      %530 = vmatpush1.bf16.msra.mxu0 %v481
      %531 = vmatprep.subr.bf16.mxu0 %v485
      %532 = vmatpush1.bf16.msra.mxu0 %v484
      %533 = vmatprep.subr.bf16.mxu0 %v488
      %534 = vmatpush1.bf16.msra.mxu0 %v487
      %535 = vmatprep.subr.bf16.mxu0 %v491
      %536 = vmatpush1.bf16.msra.mxu0 %v490
      %537 = vmatprep.subr.bf16.mxu0 %v494
      %538 = vmatpush1.bf16.msra.mxu0 %v493
      %539 = vmatprep.subr.bf16.mxu0 %v497
      %540 = vmatpush1.bf16.msra.mxu0 %v496
      %541 = vmatprep.subr.bf16.mxu0 %v500
      %542 = vmatpush1.bf16.msra.mxu0 %v499
      %543 = vmatprep.subr.bf16.mxu0 %v503
      %544 = vmatpush1.bf16.msra.mxu0 %v502
      %545 = vmatprep.subr.bf16.mxu0 0
      %546 = vmatpush1.bf16.msra.mxu0 0
      %547 = vmatprep.subr.bf16.mxu0 0
      %548 = vmatpush1.bf16.msra.mxu0 0
      %549 = vmatprep.subr.bf16.mxu0 0
      %550 = vmatpush1.bf16.msra.mxu0 0
      %551 = vmatprep.subr.bf16.mxu0 0
      %552 = vmatpush1.bf16.msra.mxu0 0
      %553 = vmatprep.subr.bf16.mxu0 0
      %554 = vmatpush1.bf16.msra.mxu0 0
      %555 = vmatprep.subr.bf16.mxu0 0
      %556 = vmatpush1.bf16.msra.mxu0 0
      %557 = vmatprep.subr.bf16.mxu0 0
      %558 = vmatpush1.bf16.msra.mxu0 0
      %559 = vmatprep.subr.bf16.mxu0 0
      %560 = vmatpush1.bf16.msra.mxu0 0
      %561 = vmatprep.mubr.bf16.mxu0 0
      %562 = vmatmul.mubr.bf16.gmra.mrb[0].mxu0 %v368
      %v563 = vpop.f32.mrb[0].mxu0
      %v564 = vadd.f32 0.0, %v563
      %v565 = vpop.f32.mrb[0].mxu0
      %v566 = vadd.f32 0.0, %v565
      %v567 = vpop.f32.mrb[0].mxu0
      %v568 = vpop.f32.mrb[0].mxu0
      %569 = vdwg.mxu0
      %570 = vmatprep.subr.bf16.mxu0 0
      %571 = vmatpush1.bf16.msra.mxu0 %v483
      %572 = vmatprep.subr.bf16.mxu0 0
      %573 = vmatpush1.bf16.msra.mxu0 %v486
      %574 = vmatprep.subr.bf16.mxu0 0
      %575 = vmatpush1.bf16.msra.mxu0 %v489
      %576 = vmatprep.subr.bf16.mxu0 0
      %577 = vmatpush1.bf16.msra.mxu0 %v492
      %578 = vmatprep.subr.bf16.mxu0 0
      %579 = vmatpush1.bf16.msra.mxu0 %v495
      %580 = vmatprep.subr.bf16.mxu0 0
      %581 = vmatpush1.bf16.msra.mxu0 %v498
      %582 = vmatprep.subr.bf16.mxu0 0
      %583 = vmatpush1.bf16.msra.mxu0 %v501
      %584 = vmatprep.subr.bf16.mxu0 0
      %585 = vmatpush1.bf16.msra.mxu0 %v504
      %586 = vmatprep.subr.bf16.mxu0 0
      %587 = vmatpush1.bf16.msra.mxu0 0
      %588 = vmatprep.subr.bf16.mxu0 0
      %589 = vmatpush1.bf16.msra.mxu0 0
      %590 = vmatprep.subr.bf16.mxu0 0
      %591 = vmatpush1.bf16.msra.mxu0 0
      %592 = vmatprep.subr.bf16.mxu0 0
      %593 = vmatpush1.bf16.msra.mxu0 0
      %594 = vmatprep.subr.bf16.mxu0 0
      %595 = vmatpush1.bf16.msra.mxu0 0
      %596 = vmatprep.subr.bf16.mxu0 0
      %597 = vmatpush1.bf16.msra.mxu0 0
      %598 = vmatprep.subr.bf16.mxu0 0
      %599 = vmatpush1.bf16.msra.mxu0 0
      %600 = vmatprep.subr.bf16.mxu0 0
      %601 = vmatpush1.bf16.msra.mxu0 0
      %602 = vmatprep.mubr.bf16.mxu0 0
      %603 = vmatmul.mubr.bf16.gmra.mrb[0].mxu0 %v368
      %v604 = vpop.f32.mrb[0].mxu0
      %v605 = vadd.f32 0.0, %v604
      %v606 = vpop.f32.mrb[0].mxu0
      %v607 = vpop.f32.mrb[0].mxu0
      %v608 = vpop.f32.mrb[0].mxu0
      %609 = vdwg.mxu0
      %p610 = scmp.ge.s32.totalorder %s24, 2
      // Predicated region
      $region57: #{dpc_rnn_score.2} parent=51 // pred_check
        %p611 = pneg %p610
      $region58: #{dpc_rnn_score.2} parent=51 // pred_check_branch
        %613 = sbr.rel (%p611) target = $region60
      $region59: #{dpc_rnn_score.2} parent=51 // pred_region
        %v614 = vld [vmem:[%s5] sm:$0x1]
        %v616 = vlaneseq
        %v617 = vshrl.u32 %v616, 7
        %v618 = vsub.s32 0, %v617
        %v619 = vrot.slane %v614, %v618
        %v621 = vadd.f32 %v605, %v619
        %v622 = vmax.f32 %v621, 0.0
        %v623 = vpack.c.bf16 %v622, %v622
        %v624 = vld [vmem:[%s6] sm:$0xf]
        %v625 = vld [vmem:[%s6 + $0x4] sm:$0xf]
        %v626 = vld [vmem:[%s6 + $0x8] sm:$0xf]
        %v627 = vld [vmem:[%s6 + $0xc] sm:$0xf]
        %v628 = vld [vmem:[%s6 + $0x10] sm:$0xf]
        %v629 = vld [vmem:[%s6 + $0x14] sm:$0xf]
        %v630 = vld [vmem:[%s6 + $0x18] sm:$0xf]
        %v631 = vld [vmem:[%s6 + $0x1c] sm:$0xf]
        %v632 = vld [vmem:[%s6 + $0x20] sm:$0xf]
        %v633 = vld [vmem:[%s6 + $0x24] sm:$0xf]
        %v634 = vld [vmem:[%s6 + $0x28] sm:$0xf]
        %v635 = vld [vmem:[%s6 + $0x2c] sm:$0xf]
        %v636 = vld [vmem:[%s6 + $0x30] sm:$0xf]
        %v637 = vld [vmem:[%s6 + $0x34] sm:$0xf]
        %v638 = vld [vmem:[%s6 + $0x38] sm:$0xf]
        %v639 = vld [vmem:[%s6 + $0x3c] sm:$0xf]
        %v640 = vld [vmem:[%s7] sm:$0x1]
        %v642 = vlaneseq
        %v643 = vshrl.u32 %v642, 7
        %v644 = vsub.s32 0, %v643
        %v645 = vrot.slane %v640, %v644
        %v663 = vunpack.c.l.b16 %v624
        %v664 = vunpack.c.l.b16 %v625
        %v665 = vunpack.c.l.b16 %v626
        %v666 = vunpack.c.l.b16 %v627
        %v667 = vunpack.c.l.b16 %v628
        %v668 = vunpack.c.l.b16 %v629
        %v669 = vunpack.c.l.b16 %v630
        %v670 = vunpack.c.l.b16 %v631
        %v671 = vunpack.c.l.b16 %v632
        %v672 = vunpack.c.l.b16 %v633
        %v673 = vunpack.c.l.b16 %v634
        %v674 = vunpack.c.l.b16 %v635
        %v675 = vunpack.c.l.b16 %v636
        %v676 = vunpack.c.l.b16 %v637
        %v677 = vunpack.c.l.b16 %v638
        %v678 = vunpack.c.l.b16 %v639
        %v679 = vpack.c.b16 %v664, %v663
        %v680 = vpack.c.b16 %v666, %v665
        %v681 = vpack.c.b16 %v668, %v667
        %v682 = vpack.c.b16 %v670, %v669
        %v683 = vpack.c.b16 %v672, %v671
        %v684 = vpack.c.b16 %v674, %v673
        %v685 = vpack.c.b16 %v676, %v675
        %v686 = vpack.c.b16 %v678, %v677
        %695 = vmatprep.subr.bf16.mxu0 0
        %696 = vmatpush1.bf16.msra.mxu0 %v679
        %697 = vmatprep.subr.bf16.mxu0 0
        %698 = vmatpush1.bf16.msra.mxu0 %v680
        %699 = vmatprep.subr.bf16.mxu0 0
        %700 = vmatpush1.bf16.msra.mxu0 %v681
        %701 = vmatprep.subr.bf16.mxu0 0
        %702 = vmatpush1.bf16.msra.mxu0 %v682
        %703 = vmatprep.subr.bf16.mxu0 0
        %704 = vmatpush1.bf16.msra.mxu0 %v683
        %705 = vmatprep.subr.bf16.mxu0 0
        %706 = vmatpush1.bf16.msra.mxu0 %v684
        %707 = vmatprep.subr.bf16.mxu0 0
        %708 = vmatpush1.bf16.msra.mxu0 %v685
        %709 = vmatprep.subr.bf16.mxu0 0
        %710 = vmatpush1.bf16.msra.mxu0 %v686
        %711 = vmatprep.subr.bf16.mxu0 0
        %712 = vmatpush1.bf16.msra.mxu0 0
        %713 = vmatprep.subr.bf16.mxu0 0
        %714 = vmatpush1.bf16.msra.mxu0 0
        %715 = vmatprep.subr.bf16.mxu0 0
        %716 = vmatpush1.bf16.msra.mxu0 0
        %717 = vmatprep.subr.bf16.mxu0 0
        %718 = vmatpush1.bf16.msra.mxu0 0
        %719 = vmatprep.subr.bf16.mxu0 0
        %720 = vmatpush1.bf16.msra.mxu0 0
        %721 = vmatprep.subr.bf16.mxu0 0
        %722 = vmatpush1.bf16.msra.mxu0 0
        %723 = vmatprep.subr.bf16.mxu0 0
        %724 = vmatpush1.bf16.msra.mxu0 0
        %725 = vmatprep.subr.bf16.mxu0 0
        %726 = vmatpush1.bf16.msra.mxu0 0
        %727 = vmatprep.mubr.bf16.mxu0 0
        %728 = vmatmul.mubr.bf16.gmra.mrb[0].mxu0 %v623
        %v729 = vpop.f32.mrb[0].mxu0
        %v730 = vadd.f32 %v645, %v729
        %v731 = vpop.f32.mrb[0].mxu0
        %v732 = vpop.f32.mrb[0].mxu0
        %v733 = vpop.f32.mrb[0].mxu0
        %734 = vdwg.mxu0
        %735 = vst [vmem:[%s357] sm:$0xff] %v730
      $region60: #{dpc_rnn_score.2} parent=51 // pred_fallthru
        %v736 = vphi 0, %v730
      %p737 = pneg %p610
      // Predicated region
      $region61: #{dpc_rnn_score.2} parent=51 // pred_check
        _
      $region62: #{dpc_rnn_score.2} parent=51 // pred_check_branch
        %739 = sbr.rel (%p610) target = $region64
      $region63: #{dpc_rnn_score.2} parent=51 // pred_region
        %v740 = vld [vmem:[%s345] sm:$0xff]
      $region64: #{dpc_rnn_score.2} parent=51 // pred_fallthru
        %v741 = vphi %v736, %v740
      %v742 = vmax.f32 %v741, 0.0
      %v743 = vpack.c.bf16 %v742, %v742
      %v744 = vld [vmem:[%s1] sm:$0xff]
      %v745 = vld [vmem:[%s1 + $0x8] sm:$0xf]
      %v746 = vld [vmem:[%s1 + $0xc] sm:$0xff]
      %v747 = vld [vmem:[%s1 + $0x14] sm:$0xf]
      %v748 = vld [vmem:[%s1 + $0x18] sm:$0xff]
      %v749 = vld [vmem:[%s1 + $0x20] sm:$0xf]
      %v750 = vld [vmem:[%s1 + $0x24] sm:$0xff]
      %v751 = vld [vmem:[%s1 + $0x2c] sm:$0xf]
      %v752 = vld [vmem:[%s1 + $0x30] sm:$0xff]
      %v753 = vld [vmem:[%s1 + $0x38] sm:$0xf]
      %v754 = vld [vmem:[%s1 + $0x3c] sm:$0xff]
      %v755 = vld [vmem:[%s1 + $0x44] sm:$0xf]
      %v756 = vld [vmem:[%s1 + $0x48] sm:$0xff]
      %v757 = vld [vmem:[%s1 + $0x50] sm:$0xf]
      %v758 = vld [vmem:[%s1 + $0x54] sm:$0xff]
      %v759 = vld [vmem:[%s1 + $0x5c] sm:$0xf]
      %v760 = vld [vmem:[%s1 + $0x60] sm:$0xff]
      %v761 = vld [vmem:[%s1 + $0x68] sm:$0xf]
      %v762 = vld [vmem:[%s1 + $0x6c] sm:$0xff]
      %v763 = vld [vmem:[%s1 + $0x74] sm:$0xf]
      %v764 = vld [vmem:[%s1 + $0x78] sm:$0xff]
      %v765 = vld [vmem:[%s1 + $0x80] sm:$0xf]
      %v766 = vld [vmem:[%s1 + $0x84] sm:$0xff]
      %v767 = vld [vmem:[%s1 + $0x8c] sm:$0xf]
      %v768 = vld [vmem:[%s1 + $0x90] sm:$0xff]
      %v769 = vld [vmem:[%s1 + $0x98] sm:$0xf]
      %v770 = vld [vmem:[%s1 + $0x9c] sm:$0xff]
      %v771 = vld [vmem:[%s1 + $0xa4] sm:$0xf]
      %v772 = vld [vmem:[%s1 + $0xa8] sm:$0xff]
      %v773 = vld [vmem:[%s1 + $0xb0] sm:$0xf]
      %v774 = vld [vmem:[%s1 + $0xb4] sm:$0xff]
      %v775 = vld [vmem:[%s1 + $0xbc] sm:$0xf]
      %v776 = vld [vmem:[%s4] sm:$0x7]
      %v778 = vlaneseq
      %v779 = vshrl.u32 %v778, 7
      %v780 = vsub.s32 0, %v779
      %v781 = vrot.slane %v776, %v780
      %v782 = vlaneseq
      %v783 = vshrl.u32 %v782, 7
      %v784 = vsub.s32 1, %v783
      %v785 = vrot.slane %v776, %v784
      %v786 = vlaneseq
      %v787 = vshrl.u32 %v786, 7
      %v788 = vsub.s32 2, %v787
      %v789 = vrot.slane %v776, %v788
      %v825 = vunpack.c.l.b16 %v744
      %v826 = vunpack.c.h.b16 %v744
      %v827 = vunpack.c.l.b16 %v745
      %v828 = vunpack.c.l.b16 %v746
      %v829 = vunpack.c.h.b16 %v746
      %v830 = vunpack.c.l.b16 %v747
      %v831 = vunpack.c.l.b16 %v748
      %v832 = vunpack.c.h.b16 %v748
      %v833 = vunpack.c.l.b16 %v749
      %v834 = vunpack.c.l.b16 %v750
      %v835 = vunpack.c.h.b16 %v750
      %v836 = vunpack.c.l.b16 %v751
      %v837 = vunpack.c.l.b16 %v752
      %v838 = vunpack.c.h.b16 %v752
      %v839 = vunpack.c.l.b16 %v753
      %v840 = vunpack.c.l.b16 %v754
      %v841 = vunpack.c.h.b16 %v754
      %v842 = vunpack.c.l.b16 %v755
      %v843 = vunpack.c.l.b16 %v756
      %v844 = vunpack.c.h.b16 %v756
      %v845 = vunpack.c.l.b16 %v757
      %v846 = vunpack.c.l.b16 %v758
      %v847 = vunpack.c.h.b16 %v758
      %v848 = vunpack.c.l.b16 %v759
      %v849 = vunpack.c.l.b16 %v760
      %v850 = vunpack.c.h.b16 %v760
      %v851 = vunpack.c.l.b16 %v761
      %v852 = vunpack.c.l.b16 %v762
      %v853 = vunpack.c.h.b16 %v762
      %v854 = vunpack.c.l.b16 %v763
      %v855 = vunpack.c.l.b16 %v764
      %v856 = vunpack.c.h.b16 %v764
      %v857 = vunpack.c.l.b16 %v765
      %v858 = vunpack.c.l.b16 %v766
      %v859 = vunpack.c.h.b16 %v766
      %v860 = vunpack.c.l.b16 %v767
      %v861 = vunpack.c.l.b16 %v768
      %v862 = vunpack.c.h.b16 %v768
      %v863 = vunpack.c.l.b16 %v769
      %v864 = vunpack.c.l.b16 %v770
      %v865 = vunpack.c.h.b16 %v770
      %v866 = vunpack.c.l.b16 %v771
      %v867 = vunpack.c.l.b16 %v772
      %v868 = vunpack.c.h.b16 %v772
      %v869 = vunpack.c.l.b16 %v773
      %v870 = vunpack.c.l.b16 %v774
      %v871 = vunpack.c.h.b16 %v774
      %v872 = vunpack.c.l.b16 %v775
      %v873 = vpack.c.b16 %v828, %v825
      %v874 = vpack.c.b16 %v829, %v826
      %v875 = vpack.c.b16 %v830, %v827
      %v876 = vpack.c.b16 %v834, %v831
      %v877 = vpack.c.b16 %v835, %v832
      %v878 = vpack.c.b16 %v836, %v833
      %v879 = vpack.c.b16 %v840, %v837
      %v880 = vpack.c.b16 %v841, %v838
      %v881 = vpack.c.b16 %v842, %v839
      %v882 = vpack.c.b16 %v846, %v843
      %v883 = vpack.c.b16 %v847, %v844
      %v884 = vpack.c.b16 %v848, %v845
      %v885 = vpack.c.b16 %v852, %v849
      %v886 = vpack.c.b16 %v853, %v850
      %v887 = vpack.c.b16 %v854, %v851
      %v888 = vpack.c.b16 %v858, %v855
      %v889 = vpack.c.b16 %v859, %v856
      %v890 = vpack.c.b16 %v860, %v857
      %v891 = vpack.c.b16 %v864, %v861
      %v892 = vpack.c.b16 %v865, %v862
      %v893 = vpack.c.b16 %v866, %v863
      %v894 = vpack.c.b16 %v870, %v867
      %v895 = vpack.c.b16 %v871, %v868
      %v896 = vpack.c.b16 %v872, %v869
      %921 = vmatprep.subr.bf16.mxu0 %v874
      %922 = vmatpush1.bf16.msra.mxu0 %v873
      %923 = vmatprep.subr.bf16.mxu0 %v877
      %924 = vmatpush1.bf16.msra.mxu0 %v876
      %925 = vmatprep.subr.bf16.mxu0 %v880
      %926 = vmatpush1.bf16.msra.mxu0 %v879
      %927 = vmatprep.subr.bf16.mxu0 %v883
      %928 = vmatpush1.bf16.msra.mxu0 %v882
      %929 = vmatprep.subr.bf16.mxu0 %v886
      %930 = vmatpush1.bf16.msra.mxu0 %v885
      %931 = vmatprep.subr.bf16.mxu0 %v889
      %932 = vmatpush1.bf16.msra.mxu0 %v888
      %933 = vmatprep.subr.bf16.mxu0 %v892
      %934 = vmatpush1.bf16.msra.mxu0 %v891
      %935 = vmatprep.subr.bf16.mxu0 %v895
      %936 = vmatpush1.bf16.msra.mxu0 %v894
      %937 = vmatprep.subr.bf16.mxu0 0
      %938 = vmatpush1.bf16.msra.mxu0 0
      %939 = vmatprep.subr.bf16.mxu0 0
      %940 = vmatpush1.bf16.msra.mxu0 0
      %941 = vmatprep.subr.bf16.mxu0 0
      %942 = vmatpush1.bf16.msra.mxu0 0
      %943 = vmatprep.subr.bf16.mxu0 0
      %944 = vmatpush1.bf16.msra.mxu0 0
      %945 = vmatprep.subr.bf16.mxu0 0
      %946 = vmatpush1.bf16.msra.mxu0 0
      %947 = vmatprep.subr.bf16.mxu0 0
      %948 = vmatpush1.bf16.msra.mxu0 0
      %949 = vmatprep.subr.bf16.mxu0 0
      %950 = vmatpush1.bf16.msra.mxu0 0
      %951 = vmatprep.subr.bf16.mxu0 0
      %952 = vmatpush1.bf16.msra.mxu0 0
      %953 = vmatprep.mubr.bf16.mxu0 0
      %954 = vmatmul.mubr.bf16.gmra.mrb[0].mxu0 %v743
      %v955 = vpop.f32.mrb[0].mxu0
      %v956 = vadd.f32 %v781, %v955
      %v957 = vpop.f32.mrb[0].mxu0
      %v958 = vadd.f32 %v785, %v957
      %v959 = vpop.f32.mrb[0].mxu0
      %v960 = vpop.f32.mrb[0].mxu0
      %961 = vdwg.mxu0
      %962 = vmatprep.subr.bf16.mxu0 0
      %963 = vmatpush1.bf16.msra.mxu0 %v875
      %964 = vmatprep.subr.bf16.mxu0 0
      %965 = vmatpush1.bf16.msra.mxu0 %v878
      %966 = vmatprep.subr.bf16.mxu0 0
      %967 = vmatpush1.bf16.msra.mxu0 %v881
      %968 = vmatprep.subr.bf16.mxu0 0
      %969 = vmatpush1.bf16.msra.mxu0 %v884
      %970 = vmatprep.subr.bf16.mxu0 0
      %971 = vmatpush1.bf16.msra.mxu0 %v887
      %972 = vmatprep.subr.bf16.mxu0 0
      %973 = vmatpush1.bf16.msra.mxu0 %v890
      %974 = vmatprep.subr.bf16.mxu0 0
      %975 = vmatpush1.bf16.msra.mxu0 %v893
      %976 = vmatprep.subr.bf16.mxu0 0
      %977 = vmatpush1.bf16.msra.mxu0 %v896
      %978 = vmatprep.subr.bf16.mxu0 0
      %979 = vmatpush1.bf16.msra.mxu0 0
      %980 = vmatprep.subr.bf16.mxu0 0
      %981 = vmatpush1.bf16.msra.mxu0 0
      %982 = vmatprep.subr.bf16.mxu0 0
      %983 = vmatpush1.bf16.msra.mxu0 0
      %984 = vmatprep.subr.bf16.mxu0 0
      %985 = vmatpush1.bf16.msra.mxu0 0
      %986 = vmatprep.subr.bf16.mxu0 0
      %987 = vmatpush1.bf16.msra.mxu0 0
      %988 = vmatprep.subr.bf16.mxu0 0
      %989 = vmatpush1.bf16.msra.mxu0 0
      %990 = vmatprep.subr.bf16.mxu0 0
      %991 = vmatpush1.bf16.msra.mxu0 0
      %992 = vmatprep.subr.bf16.mxu0 0
      %993 = vmatpush1.bf16.msra.mxu0 0
      %994 = vmatprep.mubr.bf16.mxu0 0
      %995 = vmatmul.mubr.bf16.gmra.mrb[0].mxu0 %v743
      %v996 = vpop.f32.mrb[0].mxu0
      %v997 = vadd.f32 %v789, %v996
      %v998 = vpop.f32.mrb[0].mxu0
      %v999 = vpop.f32.mrb[0].mxu0
      %v1000 = vpop.f32.mrb[0].mxu0
      %1001 = vdwg.mxu0
      %v1002 = vadd.f32 %v956, %v564
      %v1003 = vxor.u32 %v1002, 2147483648
      %v1004 = vmul.f32 %v1003, 1.442695
      %v1005 = vpow.pop %v1004
      %v1006 = vadd.f32 %v1005, 1.0
      %v1007 = vrcp.pop %v1006
      %v1008 = vmul.f32 1.0, %v1007
      %v1009 = vadd.f32 %v958, %v566
      %v1010 = vxor.u32 %v1009, 2147483648
      %v1011 = vmul.f32 %v1010, 1.442695
      %v1012 = vpow.pop %v1011
      %v1013 = vadd.f32 %v1012, 1.0
      %v1014 = vrcp.pop %v1013
      %v1015 = vmul.f32 1.0, %v1014
      %v1016 = vmul.f32 %v1008, %v367
      %v1017 = vpack.c.bf16 %v1016, %v1016
      %v1018 = vld [vmem:[%s3] sm:$0xf]
      %v1019 = vld [vmem:[%s3 + $0x4] sm:$0xf]
      %v1020 = vld [vmem:[%s3 + $0x8] sm:$0xf]
      %v1021 = vld [vmem:[%s3 + $0xc] sm:$0xf]
      %v1022 = vld [vmem:[%s3 + $0x10] sm:$0xf]
      %v1023 = vld [vmem:[%s3 + $0x14] sm:$0xf]
      %v1024 = vld [vmem:[%s3 + $0x18] sm:$0xf]
      %v1025 = vld [vmem:[%s3 + $0x1c] sm:$0xf]
      %v1026 = vld [vmem:[%s3 + $0x20] sm:$0xf]
      %v1027 = vld [vmem:[%s3 + $0x24] sm:$0xf]
      %v1028 = vld [vmem:[%s3 + $0x28] sm:$0xf]
      %v1029 = vld [vmem:[%s3 + $0x2c] sm:$0xf]
      %v1030 = vld [vmem:[%s3 + $0x30] sm:$0xf]
      %v1031 = vld [vmem:[%s3 + $0x34] sm:$0xf]
      %v1032 = vld [vmem:[%s3 + $0x38] sm:$0xf]
      %v1033 = vld [vmem:[%s3 + $0x3c] sm:$0xf]
      %v1050 = vunpack.c.l.b16 %v1018
      %v1051 = vunpack.c.l.b16 %v1019
      %v1052 = vunpack.c.l.b16 %v1020
      %v1053 = vunpack.c.l.b16 %v1021
      %v1054 = vunpack.c.l.b16 %v1022
      %v1055 = vunpack.c.l.b16 %v1023
      %v1056 = vunpack.c.l.b16 %v1024
      %v1057 = vunpack.c.l.b16 %v1025
      %v1058 = vunpack.c.l.b16 %v1026
      %v1059 = vunpack.c.l.b16 %v1027
      %v1060 = vunpack.c.l.b16 %v1028
      %v1061 = vunpack.c.l.b16 %v1029
      %v1062 = vunpack.c.l.b16 %v1030
      %v1063 = vunpack.c.l.b16 %v1031
      %v1064 = vunpack.c.l.b16 %v1032
      %v1065 = vunpack.c.l.b16 %v1033
      %v1066 = vpack.c.b16 %v1051, %v1050
      %v1067 = vpack.c.b16 %v1053, %v1052
      %v1068 = vpack.c.b16 %v1055, %v1054
      %v1069 = vpack.c.b16 %v1057, %v1056
      %v1070 = vpack.c.b16 %v1059, %v1058
      %v1071 = vpack.c.b16 %v1061, %v1060
      %v1072 = vpack.c.b16 %v1063, %v1062
      %v1073 = vpack.c.b16 %v1065, %v1064
      %1082 = vmatprep.subr.bf16.mxu0 0
      %1083 = vmatpush1.bf16.msra.mxu0 %v1066
      %1084 = vmatprep.subr.bf16.mxu0 0
      %1085 = vmatpush1.bf16.msra.mxu0 %v1067
      %1086 = vmatprep.subr.bf16.mxu0 0
      %1087 = vmatpush1.bf16.msra.mxu0 %v1068
      %1088 = vmatprep.subr.bf16.mxu0 0
      %1089 = vmatpush1.bf16.msra.mxu0 %v1069
      %1090 = vmatprep.subr.bf16.mxu0 0
      %1091 = vmatpush1.bf16.msra.mxu0 %v1070
      %1092 = vmatprep.subr.bf16.mxu0 0
      %1093 = vmatpush1.bf16.msra.mxu0 %v1071
      %1094 = vmatprep.subr.bf16.mxu0 0
      %1095 = vmatpush1.bf16.msra.mxu0 %v1072
      %1096 = vmatprep.subr.bf16.mxu0 0
      %1097 = vmatpush1.bf16.msra.mxu0 %v1073
      %1098 = vmatprep.subr.bf16.mxu0 0
      %1099 = vmatpush1.bf16.msra.mxu0 0
      %1100 = vmatprep.subr.bf16.mxu0 0
      %1101 = vmatpush1.bf16.msra.mxu0 0
      %1102 = vmatprep.subr.bf16.mxu0 0
      %1103 = vmatpush1.bf16.msra.mxu0 0
      %1104 = vmatprep.subr.bf16.mxu0 0
      %1105 = vmatpush1.bf16.msra.mxu0 0
      %1106 = vmatprep.subr.bf16.mxu0 0
      %1107 = vmatpush1.bf16.msra.mxu0 0
      %1108 = vmatprep.subr.bf16.mxu0 0
      %1109 = vmatpush1.bf16.msra.mxu0 0
      %1110 = vmatprep.subr.bf16.mxu0 0
      %1111 = vmatpush1.bf16.msra.mxu0 0
      %1112 = vmatprep.subr.bf16.mxu0 0
      %1113 = vmatpush1.bf16.msra.mxu0 0
      %1114 = vmatprep.mubr.bf16.mxu0 0
      %1115 = vmatmul.mubr.bf16.gmra.mrb[0].mxu0 %v1017
      %v1116 = vpop.f32.mrb[0].mxu0
      %v1117 = vadd.f32 0.0, %v1116
      %v1118 = vpop.f32.mrb[0].mxu0
      %v1119 = vpop.f32.mrb[0].mxu0
      %v1120 = vpop.f32.mrb[0].mxu0
      %1121 = vdwg.mxu0
      %v1122 = vadd.f32 %v997, %v1117
      %v1123 = vtanh.pop %v1122
      %v1124 = vsub.f32 1.0, %v1015
      %v1125 = vmul.f32 %v367, %v1124
      %v1126 = vmul.f32 %v1123, %v1015
      %v1127 = vadd.f32 %v1125, %v1126
      %1128 = vst [vmem:[#allocation2] sm:$0xff] %v1127
      %s1129 = ssub.s32 %s24, 2
      %p1130 = scmp.gt.s32.totalorder %s1129, 0
      %s1131 = scalar_select %p1130, %s1129, 0
      %p1132 = scmp.lt.s32.totalorder %s1131, 1
      %s1133 = scalar_select %p1132, %s1131, 1
      %p1134 = scmp.lt.s32.totalorder %s23, 0
      %s1135 = scalar_select %p1134, %s23, 0
      %s1136 = sadd.s32 %s1135, %s1133
      %s1137 = smul.addr %s1136, 8
      %s1138 = scalar_lea.vmem %s8, %s1137
      // Predicated region
      $region65: #{dpc_rnn_score.2} parent=51 // pred_check
        %p1139 = pneg %p236
      $region66: #{dpc_rnn_score.2} parent=51 // pred_check_branch
        %1141 = sbr.rel (%p1139) target = $region68
      $region67: #{dpc_rnn_score.2} parent=51 // pred_region
        %s1142 = ssub.s32 %s24, 2
        %p1143 = scmp.gt.s32.totalorder %s1142, 0
        %s1144 = scalar_select %p1143, %s1142, 0
      $region68: #{dpc_rnn_score.2} parent=51 // pred_fallthru
        _
    $region52: #{dpc_rnn_score.2} parent=5 // pred_fallthru
      _
    %p1145 = scmp.le.s32.totalorder 2, %s14
    // Predicated region
    $region69: #{dpc_rnn_score.2} parent=5 // pred_check
      %p1146 = pneg %p1145
    $region70: #{dpc_rnn_score.2} parent=5 // pred_check_branch
      %1148 = sbr.rel (%p1146) target = $region72
    $region71: #{dpc_rnn_score.2} parent=5 // pred_region
      %s1149 = ssub.s32 %s14, 2
      // Predicated region
      $region73: #{dpc_rnn_score.2} parent=71 // pred_check
        %p1150 = pneg %p242
      $region74: #{dpc_rnn_score.2} parent=71 // pred_check_branch
        %1152 = sbr.rel (%p1150) target = $region76
      $region75: #{dpc_rnn_score.2} parent=71 // pred_region
        %s1153 = ssub.s32 %s26, 2
        %p1154 = scmp.gt.s32.totalorder %s1153, 0
        %s1155 = scalar_select %p1154, %s1153, 0
        %p1156 = scmp.lt.s32.totalorder %s1155, 1
        %s1157 = scalar_select %p1156, %s1155, 1
        %p1158 = scmp.lt.s32.totalorder %s25, 0
        %s1159 = scalar_select %p1158, %s25, 0
        %s1160 = sadd.s32 %s1159, %s1157
        %s1161 = smul.addr %s1160, 8
        %s1162 = scalar_lea.vmem %s8, %s1161
      $region76: #{dpc_rnn_score.2} parent=71 // pred_fallthru
        _
    $region72: #{dpc_rnn_score.2} parent=5 // pred_fallthru
      _
  $region6: #{dpc_rnn_score.2} parent=0 // loop_footer
    %s18 = sadd.s32 1, %s14
  $region7: #{dpc_rnn_score.2} parent=0 // loop_footer_branch
    %13 = sbr.rel target = $region3
  $region8: #{dpc_rnn_score.2} parent=0 // loop_exit
    _

// kernel: dpc_rnn_score.3
$region0: #{dpc_rnn_score.3}
  #allocation0 [shape = 'u32[]', space=smem, size = 0x4, offset = 0x4, fixed_abs, tag = 'smem constant byte address 0x4 - core index']
  #allocation1 [shape = 'u32[144,128]{1,0:T(1,128)}', space=vmem, size = 0x12000, scoped, tag = 'internal scratch']
  %s0 = inlined_call_operand.vmem [shape: bf16[128,128], index: 0, kind: input, shape index: {}]
  %s1 = inlined_call_operand.vmem [shape: bf16[128,128], index: 1, kind: input, shape index: {}]
  %s2 = inlined_call_operand.vmem [shape: f32[128,128], index: 2, kind: output, shape index: {}]
  %s3 = sld [smem:[#allocation0]]
  $region18: #{dpc_rnn_score.3} parent=0
    _
  %s5 = ssub.s32 1, %s3
  %s6 = scalar_select 0, %s5, %s3
  // Predicated region
  $region2: #{dpc_rnn_score.3} parent=0 // pred_check
    _
  $region3: #{dpc_rnn_score.3} parent=0 // pred_check_branch
    %8 = sbr.rel (0) target = $region5
  $region4: #{dpc_rnn_score.3} parent=0 // pred_region
    _
  $region5: #{dpc_rnn_score.3} parent=0 // pred_fallthru
    _
  // Predicated region
  $region6: #{dpc_rnn_score.3} parent=0 // pred_check
    _
  $region7: #{dpc_rnn_score.3} parent=0 // pred_check_branch
    %10 = sbr.rel (0) target = $region9
  $region8: #{dpc_rnn_score.3} parent=0 // pred_region
    _
  $region9: #{dpc_rnn_score.3} parent=0 // pred_fallthru
    _
  %v12 = vld [vmem:[%s0] sm:$0xf]
  %v13 = vld [vmem:[%s0 + $0x4] sm:$0xf]
  %v14 = vld [vmem:[%s0 + $0x8] sm:$0xf]
  %v15 = vld [vmem:[%s0 + $0xc] sm:$0xf]
  %v16 = vld [vmem:[%s0 + $0x10] sm:$0xf]
  %v17 = vld [vmem:[%s0 + $0x14] sm:$0xf]
  %v18 = vld [vmem:[%s0 + $0x18] sm:$0xf]
  %v19 = vld [vmem:[%s0 + $0x1c] sm:$0xf]
  %v20 = vld [vmem:[%s0 + $0x20] sm:$0xf]
  %v21 = vld [vmem:[%s0 + $0x24] sm:$0xf]
  %v22 = vld [vmem:[%s0 + $0x28] sm:$0xf]
  %v23 = vld [vmem:[%s0 + $0x2c] sm:$0xf]
  %v24 = vld [vmem:[%s0 + $0x30] sm:$0xf]
  %v25 = vld [vmem:[%s0 + $0x34] sm:$0xf]
  %v26 = vld [vmem:[%s0 + $0x38] sm:$0xf]
  %v27 = vld [vmem:[%s0 + $0x3c] sm:$0xf]
  %v28 = vld [vmem:[%s1] sm:$0xf]
  %v29 = vld [vmem:[%s1 + $0x4] sm:$0xf]
  %v30 = vld [vmem:[%s1 + $0x8] sm:$0xf]
  %v31 = vld [vmem:[%s1 + $0xc] sm:$0xf]
  %v32 = vld [vmem:[%s1 + $0x10] sm:$0xf]
  %v33 = vld [vmem:[%s1 + $0x14] sm:$0xf]
  %v34 = vld [vmem:[%s1 + $0x18] sm:$0xf]
  %v35 = vld [vmem:[%s1 + $0x1c] sm:$0xf]
  %v36 = vld [vmem:[%s1 + $0x20] sm:$0xf]
  %v37 = vld [vmem:[%s1 + $0x24] sm:$0xf]
  %v38 = vld [vmem:[%s1 + $0x28] sm:$0xf]
  %v39 = vld [vmem:[%s1 + $0x2c] sm:$0xf]
  %v40 = vld [vmem:[%s1 + $0x30] sm:$0xf]
  %v41 = vld [vmem:[%s1 + $0x34] sm:$0xf]
  %v42 = vld [vmem:[%s1 + $0x38] sm:$0xf]
  %v43 = vld [vmem:[%s1 + $0x3c] sm:$0xf]
  %v60 = vunpack.c.l.b16 %v12
  %v61 = vunpack.c.l.b16 %v13
  %v62 = vunpack.c.l.b16 %v14
  %v63 = vunpack.c.l.b16 %v15
  %v64 = vunpack.c.l.b16 %v16
  %v65 = vunpack.c.l.b16 %v17
  %v66 = vunpack.c.l.b16 %v18
  %v67 = vunpack.c.l.b16 %v19
  %v68 = vunpack.c.l.b16 %v20
  %v69 = vunpack.c.l.b16 %v21
  %v70 = vunpack.c.l.b16 %v22
  %v71 = vunpack.c.l.b16 %v23
  %v72 = vunpack.c.l.b16 %v24
  %v73 = vunpack.c.l.b16 %v25
  %v74 = vunpack.c.l.b16 %v26
  %v75 = vunpack.c.l.b16 %v27
  %v76 = vpack.c.b16 %v61, %v60
  %v77 = vpack.c.b16 %v63, %v62
  %v78 = vpack.c.b16 %v65, %v64
  %v79 = vpack.c.b16 %v67, %v66
  %v80 = vpack.c.b16 %v69, %v68
  %v81 = vpack.c.b16 %v71, %v70
  %v82 = vpack.c.b16 %v73, %v72
  %v83 = vpack.c.b16 %v75, %v74
  %v108 = vunpack.c.l.b16 %v28
  %v109 = vunpack.c.l.b16 %v29
  %v110 = vunpack.c.l.b16 %v30
  %v111 = vunpack.c.l.b16 %v31
  %v112 = vunpack.c.l.b16 %v32
  %v113 = vunpack.c.l.b16 %v33
  %v114 = vunpack.c.l.b16 %v34
  %v115 = vunpack.c.l.b16 %v35
  %v116 = vunpack.c.l.b16 %v36
  %v117 = vunpack.c.l.b16 %v37
  %v118 = vunpack.c.l.b16 %v38
  %v119 = vunpack.c.l.b16 %v39
  %v120 = vunpack.c.l.b16 %v40
  %v121 = vunpack.c.l.b16 %v41
  %v122 = vunpack.c.l.b16 %v42
  %v123 = vunpack.c.l.b16 %v43
  %v124 = vpack.c.b16 %v109, %v108
  %v125 = vpack.c.b16 %v111, %v110
  %v126 = vpack.c.b16 %v113, %v112
  %v127 = vpack.c.b16 %v115, %v114
  %v128 = vpack.c.b16 %v117, %v116
  %v129 = vpack.c.b16 %v119, %v118
  %v130 = vpack.c.b16 %v121, %v120
  %v131 = vpack.c.b16 %v123, %v122
  %140 = vmatprep.subr.bf16.mxu0 0
  %141 = vmatpush1.bf16.xpose.msra.mxu0 %v124
  %142 = vmatprep.subr.bf16.mxu0 0
  %143 = vmatpush1.bf16.xpose.msra.mxu0 %v125
  %144 = vmatprep.subr.bf16.mxu0 0
  %145 = vmatpush1.bf16.xpose.msra.mxu0 %v126
  %146 = vmatprep.subr.bf16.mxu0 0
  %147 = vmatpush1.bf16.xpose.msra.mxu0 %v127
  %148 = vmatprep.subr.bf16.mxu0 0
  %149 = vmatpush1.bf16.xpose.msra.mxu0 %v128
  %150 = vmatprep.subr.bf16.mxu0 0
  %151 = vmatpush1.bf16.xpose.msra.mxu0 %v129
  %152 = vmatprep.subr.bf16.mxu0 0
  %153 = vmatpush1.bf16.xpose.msra.mxu0 %v130
  %154 = vmatprep.subr.bf16.mxu0 0
  %155 = vmatpush1.bf16.xpose.msra.mxu0 %v131
  %156 = vmatprep.subr.bf16.mxu0 0
  %157 = vmatpush1.bf16.xpose.msra.mxu0 0
  %158 = vmatprep.subr.bf16.mxu0 0
  %159 = vmatpush1.bf16.xpose.msra.mxu0 0
  %160 = vmatprep.subr.bf16.mxu0 0
  %161 = vmatpush1.bf16.xpose.msra.mxu0 0
  %162 = vmatprep.subr.bf16.mxu0 0
  %163 = vmatpush1.bf16.xpose.msra.mxu0 0
  %164 = vmatprep.subr.bf16.mxu0 0
  %165 = vmatpush1.bf16.xpose.msra.mxu0 0
  %166 = vmatprep.subr.bf16.mxu0 0
  %167 = vmatpush1.bf16.xpose.msra.mxu0 0
  %168 = vmatprep.subr.bf16.mxu0 0
  %169 = vmatpush1.bf16.xpose.msra.mxu0 0
  %170 = vmatprep.subr.bf16.mxu0 0
  %171 = vmatpush1.bf16.xpose.msra.mxu0 0
  %172 = vmatprep.mubr.bf16.mxu0 0
  %173 = vmatmul.mubr.bf16.gmra.mrb[0].mxu0 %v76
  %v174 = vpop.f32.mrb[0].mxu0
  %v175 = vadd.f32 0.0, %v174
  %v176 = vpop.f32.mrb[0].mxu0
  %v177 = vpop.f32.mrb[0].mxu0
  %v178 = vadd.f32 0.0, %v177
  %v179 = vpop.f32.mrb[0].mxu0
  %180 = vmatprep.mubr.bf16.mxu0 0
  %181 = vmatmul.mubr.bf16.gmra.mrb[0].mxu0 %v77
  %v182 = vpop.f32.mrb[0].mxu0
  %v183 = vadd.f32 0.0, %v182
  %v184 = vpop.f32.mrb[0].mxu0
  %v185 = vpop.f32.mrb[0].mxu0
  %v186 = vadd.f32 0.0, %v185
  %v187 = vpop.f32.mrb[0].mxu0
  %188 = vmatprep.mubr.bf16.mxu0 0
  %189 = vmatmul.mubr.bf16.gmra.mrb[0].mxu0 %v78
  %v190 = vpop.f32.mrb[0].mxu0
  %v191 = vadd.f32 0.0, %v190
  %v192 = vpop.f32.mrb[0].mxu0
  %v193 = vpop.f32.mrb[0].mxu0
  %v194 = vadd.f32 0.0, %v193
  %v195 = vpop.f32.mrb[0].mxu0
  %196 = vmatprep.mubr.bf16.mxu0 0
  %197 = vmatmul.mubr.bf16.gmra.mrb[0].mxu0 %v79
  %v198 = vpop.f32.mrb[0].mxu0
  %v199 = vadd.f32 0.0, %v198
  %v200 = vpop.f32.mrb[0].mxu0
  %v201 = vpop.f32.mrb[0].mxu0
  %v202 = vadd.f32 0.0, %v201
  %v203 = vpop.f32.mrb[0].mxu0
  %204 = vmatprep.mubr.bf16.mxu0 0
  %205 = vmatmul.mubr.bf16.gmra.mrb[0].mxu0 %v80
  %v206 = vpop.f32.mrb[0].mxu0
  %v207 = vadd.f32 0.0, %v206
  %v208 = vpop.f32.mrb[0].mxu0
  %v209 = vpop.f32.mrb[0].mxu0
  %v210 = vadd.f32 0.0, %v209
  %v211 = vpop.f32.mrb[0].mxu0
  %212 = vmatprep.mubr.bf16.mxu0 0
  %213 = vmatmul.mubr.bf16.gmra.mrb[0].mxu0 %v81
  %v214 = vpop.f32.mrb[0].mxu0
  %v215 = vadd.f32 0.0, %v214
  %v216 = vpop.f32.mrb[0].mxu0
  %v217 = vpop.f32.mrb[0].mxu0
  %v218 = vadd.f32 0.0, %v217
  %v219 = vpop.f32.mrb[0].mxu0
  %220 = vmatprep.mubr.bf16.mxu0 0
  %221 = vmatmul.mubr.bf16.gmra.mrb[0].mxu0 %v82
  %v222 = vpop.f32.mrb[0].mxu0
  %v223 = vadd.f32 0.0, %v222
  %v224 = vpop.f32.mrb[0].mxu0
  %v225 = vpop.f32.mrb[0].mxu0
  %v226 = vadd.f32 0.0, %v225
  %v227 = vpop.f32.mrb[0].mxu0
  %228 = vmatprep.mubr.bf16.mxu0 0
  %229 = vmatmul.mubr.bf16.gmra.mrb[0].mxu0 %v83
  %v230 = vpop.f32.mrb[0].mxu0
  %v231 = vadd.f32 0.0, %v230
  %v232 = vpop.f32.mrb[0].mxu0
  %v233 = vpop.f32.mrb[0].mxu0
  %v234 = vadd.f32 0.0, %v233
  %v235 = vpop.f32.mrb[0].mxu0
  %236 = vdwg.mxu0
  %237 = vst [vmem:[%s2] sm:$0xff] %v175
  %238 = vst [vmem:[%s2 + $0x8] sm:$0xff] %v178
  %239 = vst [vmem:[%s2 + $0x10] sm:$0xff] %v183
  %240 = vst [vmem:[%s2 + $0x18] sm:$0xff] %v186
  %241 = vst [vmem:[%s2 + $0x20] sm:$0xff] %v191
  %242 = vst [vmem:[%s2 + $0x28] sm:$0xff] %v194
  %243 = vst [vmem:[%s2 + $0x30] sm:$0xff] %v199
  %244 = vst [vmem:[%s2 + $0x38] sm:$0xff] %v202
  %245 = vst [vmem:[%s2 + $0x40] sm:$0xff] %v207
  %246 = vst [vmem:[%s2 + $0x48] sm:$0xff] %v210
  %247 = vst [vmem:[%s2 + $0x50] sm:$0xff] %v215
  %248 = vst [vmem:[%s2 + $0x58] sm:$0xff] %v218
  %249 = vst [vmem:[%s2 + $0x60] sm:$0xff] %v223
  %250 = vst [vmem:[%s2 + $0x68] sm:$0xff] %v226
  %251 = vst [vmem:[%s2 + $0x70] sm:$0xff] %v231
  %252 = vst [vmem:[%s2 + $0x78] sm:$0xff] %v234
  // Predicated region
  $region10: #{dpc_rnn_score.3} parent=0 // pred_check
    _
  $region11: #{dpc_rnn_score.3} parent=0 // pred_check_branch
    %254 = sbr.rel (0) target = $region13
  $region12: #{dpc_rnn_score.3} parent=0 // pred_region
    _
  $region13: #{dpc_rnn_score.3} parent=0 // pred_fallthru
    _
  // Predicated region
  $region14: #{dpc_rnn_score.3} parent=0 // pred_check
    _
  $region15: #{dpc_rnn_score.3} parent=0 // pred_check_branch
    %256 = sbr.rel (0) target = $region17
  $region16: #{dpc_rnn_score.3} parent=0 // pred_region
    _
  $region17: #{dpc_rnn_score.3} parent=0 // pred_fallthru
    _

</llo_original>
